<compile_context>
chip_gen: v7x
topology: tpu7x:2x2x1
jax: 0.10.0
libtpu: 0.0.40
codegen_flags: <defaults>
</compile_context>

<pallas_src>
import jax
import jax.numpy as jnp
from jax import lax
from jax.experimental import pallas as pl
from jax.experimental.pallas import tpu as pltpu


# ----------------------------- helpers --------------------------------------


def _round_up(x, m):
    return (x + m - 1) // m * m


def _largest_divisor_leq(n, cap):
    tc = min(cap, n)
    while n % tc != 0:
        tc -= 1
    return tc


def _pad_and_reorder_gates(w, H, Hp):
    """(..., 4H) in torch gate order (i,f,g,o) -> (..., 4Hp) in order (i,f,o,g),
    each gate zero-padded from H to Hp columns."""
    i = w[..., 0 * H:1 * H]
    f = w[..., 1 * H:2 * H]
    g = w[..., 2 * H:3 * H]
    o = w[..., 3 * H:4 * H]
    pad = [(0, 0)] * (w.ndim - 1) + [(0, Hp - H)]
    return jnp.concatenate([jnp.pad(m, pad) for m in (i, f, o, g)], axis=-1)


# ----------------------------- kernel ---------------------------------------


def _ef_lstm_kernel(x_ref, wih_ref, b_ref, whh_ref, w1_ref, b1_ref, w2_ref,
                    b2_ref, out_ref, h_sc, c_sc, gx_sc):
    """One time-chunk of the fused EF_LSTM forward.

    x_ref   : (Tc*Bp, D)   time-major modality-concat inputs for this chunk
    gx_sc   : (Tc*Bp, 4Hp) f32 VMEM scratch for the chunk's input projection
    h_sc/c_sc: (Bp, Hp)    f32 persistent recurrent state
    """
    chunk = pl.program_id(0)
    Bp, Hp = h_sc.shape
    tc = x_ref.shape[0] // Bp  # timesteps in this chunk (static)

    @pl.when(chunk == 0)
    def _():
        h_sc[...] = jnp.zeros_like(h_sc)
        c_sc[...] = jnp.zeros_like(c_sc)

    # Chunk input projection: one MXU-filling (Tc*Bp, D) x (D, 4Hp) dot with the
    # combined bias folded in.  Stays in VMEM (never written back to HBM).
    gx_sc[...] = (
        jnp.dot(x_ref[...], wih_ref[...], preferred_element_type=jnp.float32)
        + b_ref[...]
    )

    def step(s, carry):
        h, c = carry
        row = pl.multiple_of(s * Bp, 8)           # Bp % 8 == 0 -> aligned slice
        # Serial critical path per step: one (Bp,Hp)x(Hp,4Hp) MXU dot + VPU/EUP.
        gates = gx_sc[pl.ds(row, Bp), :] + jnp.dot(
            h.astype(whh_ref.dtype), whh_ref[...],
            preferred_element_type=jnp.float32)
        # Gate layout after wrapper-side permutation: [i | f | o | g], each Hp
        # wide and lane-aligned -> one sigmoid over 3Hp cols + one tanh.
        sig = jax.nn.sigmoid(gates[:, 0:3 * Hp])
        g_g = jnp.tanh(gates[:, 3 * Hp:4 * Hp])
        i_g = sig[:, 0 * Hp:1 * Hp]
        f_g = sig[:, 1 * Hp:2 * Hp]
        o_g = sig[:, 2 * Hp:3 * Hp]
        c = f_g * c + i_g * g_g
        h = o_g * jnp.tanh(c)
        return h, c

    unroll = tc if tc <= 8 else 4                 # partial unroll: vreg pressure
    h, c = lax.fori_loop(0, tc, step, (h_sc[...], c_sc[...]), unroll=unroll)
    h_sc[...] = h
    c_sc[...] = c

    @pl.when(chunk == pl.num_programs(0) - 1)
    def _():
        # fusion = final hidden state h_T, then the two tanh(Linear) heads.
        o1 = jnp.tanh(
            jnp.dot(h.astype(w1_ref.dtype), w1_ref[...],
                    preferred_element_type=jnp.float32) + b1_ref[...])
        preds = jnp.tanh(
            jnp.dot(o1.astype(w2_ref.dtype), w2_ref[...],
                    preferred_element_type=jnp.float32) + b2_ref[...])
        out_ref[...] = preds.astype(out_ref.dtype)


# ----------------------------- wrapper --------------------------------------


def ef_lstm_forward(text, audio, video, params, *,
                    matmul_dtype=jnp.bfloat16, time_chunk=None):
    """text: (B,T,t_in), audio: (B,T,a_in), video: (B,T,v_in) -> (B, label_dim)."""
    wih, whh, b, w1, b1, w2, b2 = (params[k] for k in
                                   ("wih", "whh", "b", "w1", "b1", "w2", "b2"))
    B, T, _ = text.shape
    D = wih.shape[0]
    H = whh.shape[0]
    H2 = w1.shape[1]
    L = w2.shape[1]

    Bp = _round_up(B, 8)          # sublane-aligned batch
    Hp = _round_up(H, 128)        # lane-aligned hidden / gate width
    Gp = 4 * Hp
    H2p = _round_up(H2, 128)

    # (B,T,*) -> (T,B,*) fused into the modality concat (no standalone HBM
    # transpose pass), then batch zero-padded to Bp and flattened time-major.
    x_tm = jnp.concatenate(
        [jnp.transpose(m, (1, 0, 2)) for m in (text, audio, video)], axis=2)
    if Bp != B:
        x_tm = jnp.pad(x_tm, ((0, 0), (0, Bp - B), (0, 0)))
    x2d = x_tm.reshape(T * Bp, D).astype(matmul_dtype)   # free row-major reshape

    # Param prep (once): gate reorder (i,f,g,o)->(i,f,o,g) + lane padding.
    wih_p = _pad_and_reorder_gates(wih, H, Hp).astype(matmul_dtype)          # (D, Gp)
    whh_p = _pad_and_reorder_gates(
        jnp.pad(whh, ((0, Hp - H), (0, 0))), H, Hp).astype(matmul_dtype)     # (Hp, Gp)
    b_p = _pad_and_reorder_gates(b, H, Hp).astype(jnp.float32)               # (1, Gp)
    w1_p = jnp.pad(w1, ((0, Hp - H), (0, H2p - H2))).astype(matmul_dtype)    # (Hp, H2p)
    b1_p = jnp.pad(b1, ((0, 0), (0, H2p - H2))).astype(jnp.float32)          # (1, H2p)
    w2_p = jnp.pad(w2, ((0, H2p - H2), (0, 0))).astype(matmul_dtype)         # (H2p, L)
    b2_p = b2.astype(jnp.float32)                                            # (1, L)

    # Time chunking: largest divisor of T <= cap (never a single giant chunk
    # for long T).  On v6e/v5e (128 MiB VMEM) a larger cap (64-128) amortizes
    # more per-grid-step overhead; keep 32 as a v7x-safe default.
    cap = 32 if time_chunk is None else max(1, int(time_chunk))
    tc = _largest_divisor_leq(T, cap)
    n_chunks = T // tc

    out = pl.pallas_call(
        _ef_lstm_kernel,
        out_shape=jax.ShapeDtypeStruct((Bp, L), jnp.float32),
        grid_spec=pltpu.PrefetchScalarGridSpec(
            num_scalar_prefetch=0,
            grid=(n_chunks,),
            in_specs=[
                pl.BlockSpec((tc * Bp, D), lambda i: (i, 0)),   # x chunk (streamed)
                pl.BlockSpec((D, Gp), lambda i: (0, 0)),        # W_ih
                pl.BlockSpec((1, Gp), lambda i: (0, 0)),        # b_ih + b_hh
                pl.BlockSpec((Hp, Gp), lambda i: (0, 0)),       # W_hh
                pl.BlockSpec((Hp, H2p), lambda i: (0, 0)),      # fc1 weight
                pl.BlockSpec((1, H2p), lambda i: (0, 0)),       # fc1 bias
                pl.BlockSpec((H2p, L), lambda i: (0, 0)),       # fc2 weight
                pl.BlockSpec((1, L), lambda i: (0, 0)),         # fc2 bias
            ],
            out_specs=pl.BlockSpec((Bp, L), lambda i: (0, 0)),
            scratch_shapes=[
                pltpu.VMEM((Bp, Hp), jnp.float32),              # h
                pltpu.VMEM((Bp, Hp), jnp.float32),              # c
                pltpu.VMEM((tc * Bp, Gp), jnp.float32),         # chunk gates_x
            ],
        ),
        compiler_params=pltpu.CompilerParams(
            dimension_semantics=("arbitrary",),
            vmem_limit_bytes=32 * 1024 * 1024),
    )(x2d, wih_p, b_p, whh_p, w1_p, b1_p, w2_p, b2_p)

    return out[:B]


# ----------------------------- params / reference ---------------------------


def init_params(key, t_in, a_in, v_in, hidden, label_dim):
    D = t_in + a_in + v_in
    ks = jax.random.split(key, 7)
    s = 0.1
    return {
        # LSTM (transposed vs. torch: torch weight_ih_l0 is (4H, D))
        "wih": s * jax.random.normal(ks[0], (D, 4 * hidden), jnp.float32),
        "whh": s * jax.random.normal(ks[1], (hidden, 4 * hidden), jnp.float32),
        # combined b_ih + b_hh, kept 2-D for clean VMEM layout
        "b":   s * jax.random.normal(ks[2], (1, 4 * hidden), jnp.float32),
        # fc1: (H, H//2), fc2: (H//2, label_dim)
        "w1":  s * jax.random.normal(ks[3], (hidden, hidden // 2), jnp.float32),
        "b1":  s * jax.random.normal(ks[4], (1, hidden // 2), jnp.float32),
        "w2":  s * jax.random.normal(ks[5], (hidden // 2, label_dim), jnp.float32),
        "b2":  s * jax.random.normal(ks[6], (1, label_dim), jnp.float32),
    }


def ef_lstm_reference(text, audio, video, params):
    """Pure-JAX reference of the PyTorch forward (for sanity checking)."""
    wih, whh, b = params["wih"], params["whh"], params["b"]
    w1, b1, w2, b2 = params["w1"], params["b1"], params["w2"], params["b2"]
    x = jnp.concatenate([text, audio, video], axis=2).astype(jnp.float32)
    B, T, D = x.shape
    H = whh.shape[0]
    h = jnp.zeros((B, H), jnp.float32)
    c = jnp.zeros((B, H), jnp.float32)
    for t in range(T):
        g = x[:, t, :] @ wih + h @ whh + b
        i = jax.nn.sigmoid(g[:, :H]); f = jax.nn.sigmoid(g[:, H:2 * H])
        gg = jnp.tanh(g[:, 2 * H:3 * H]); o = jax.nn.sigmoid(g[:, 3 * H:])
        c = f * c + i * gg
        h = o * jnp.tanh(c)
    o1 = jnp.tanh(h @ w1 + b1)
    return jnp.tanh(o1 @ w2 + b2)


if __name__ == "__main__":
    # small shapes consistent with the module
    B, T = 2, 8
    t_in, a_in, v_in = 4, 3, 5
    hidden, label_dim = 32, 3

    key = jax.random.PRNGKey(0)
    k_t, k_a, k_v, k_p = jax.random.split(key, 4)
    text = jax.random.normal(k_t, (B, T, t_in), jnp.float32)
    audio = jax.random.normal(k_a, (B, T, a_in), jnp.float32)
    video = jax.random.normal(k_v, (B, T, v_in), jnp.float32)
    params = init_params(k_p, t_in, a_in, v_in, hidden, label_dim)

    ref = ef_lstm_reference(text, audio, video, params)

    # f32 matmul operands: matches the reference tightly (padding adds exact zeros).
    preds_f32 = ef_lstm_forward(text, audio, video, params,
                                matmul_dtype=jnp.float32)
    jax.block_until_ready(preds_f32)
    assert preds_f32.shape == (B, label_dim)
    assert jnp.allclose(preds_f32, ref, atol=1e-5, rtol=1e-5), (preds_f32, ref)

    # default bf16 matmul operands (f32 accumulation): v6e/v7x MXU fast path.
    preds_bf16 = ef_lstm_forward(text, audio, video, params)
    jax.block_until_ready(preds_bf16)
    assert preds_bf16.shape == (B, label_dim)
    assert jnp.allclose(preds_bf16, ref, atol=5e-2, rtol=5e-2), (preds_bf16, ref)

    print("KERNEL_OK")
</pallas_src>

<mosaic_0001>
module attributes {stable_mosaic.version = 11 : i64} {
  func.func @_ef_lstm_kernel(%arg0: i32, %arg1: memref<64x12xf32, #tpu.memory_space<vmem>>, %arg2: memref<12x512xf32, #tpu.memory_space<vmem>>, %arg3: memref<1x512xf32, #tpu.memory_space<vmem>>, %arg4: memref<128x512xf32, #tpu.memory_space<vmem>>, %arg5: memref<128x128xf32, #tpu.memory_space<vmem>>, %arg6: memref<1x128xf32, #tpu.memory_space<vmem>>, %arg7: memref<128x3xf32, #tpu.memory_space<vmem>>, %arg8: memref<1x3xf32, #tpu.memory_space<vmem>>, %arg9: memref<8x3xf32, #tpu.memory_space<vmem>>, %arg10: memref<8x128xf32, #tpu.memory_space<vmem>>, %arg11: memref<8x128xf32, #tpu.memory_space<vmem>>, %arg12: memref<64x512xf32, #tpu.memory_space<vmem>>) attributes {dimension_semantics = [#tpu.dimension_semantics<arbitrary>], iteration_bounds = array<i64: 1>, scalar_prefetch = 0 : i64, scratch_operands = 3 : i64, tpu.core_type = #tpu.core_type<tc>, window_params = [{transform_indices = @transform_0, window_bounds = array<i64: 64, 12>}, {pipeline_mode = #tpu.pipeline_mode<synchronous>, transform_indices = @transform_1, window_bounds = array<i64: 12, 512>}, {pipeline_mode = #tpu.pipeline_mode<synchronous>, transform_indices = @transform_2, window_bounds = array<i64: 1, 512>}, {pipeline_mode = #tpu.pipeline_mode<synchronous>, transform_indices = @transform_3, window_bounds = array<i64: 128, 512>}, {pipeline_mode = #tpu.pipeline_mode<synchronous>, transform_indices = @transform_4, window_bounds = array<i64: 128, 128>}, {pipeline_mode = #tpu.pipeline_mode<synchronous>, transform_indices = @transform_5, window_bounds = array<i64: 1, 128>}, {pipeline_mode = #tpu.pipeline_mode<synchronous>, transform_indices = @transform_6, window_bounds = array<i64: 128, 3>}, {pipeline_mode = #tpu.pipeline_mode<synchronous>, transform_indices = @transform_7, window_bounds = array<i64: 1, 3>}, {pipeline_mode = #tpu.pipeline_mode<synchronous>, transform_indices = @transform_8, window_bounds = array<i64: 8, 3>}]} {
    %c0_i32 = arith.constant 0 : i32
    %0 = arith.cmpi eq, %arg0, %c0_i32 : i32
    %1 = arith.extui %0 : i1 to i32
    %c0_i32_0 = arith.constant 0 : i32
    %2 = arith.cmpi ne, %1, %c0_i32_0 : i32
    scf.if %2 {
      %cst_67 = arith.constant 0.000000e+00 : f32
      %201 = vector.broadcast %cst_67 : f32 to vector<8x128xf32>
      %c0_68 = arith.constant 0 : index
      %c0_69 = arith.constant 0 : index
      %202 = vector.load %arg10[%c0_68, %c0_69] : memref<8x128xf32, #tpu.memory_space<vmem>>, vector<8x128xf32>
      tpu.vector_store %arg10[%c0_68, %c0_69], %201 {strides = array<i32>} : memref<8x128xf32, #tpu.memory_space<vmem>>, vector<8x128xf32>,
      %cst_70 = arith.constant 0.000000e+00 : f32
      %203 = vector.broadcast %cst_70 : f32 to vector<8x128xf32>
      %c0_71 = arith.constant 0 : index
      %c0_72 = arith.constant 0 : index
      %204 = vector.load %arg11[%c0_71, %c0_72] : memref<8x128xf32, #tpu.memory_space<vmem>>, vector<8x128xf32>
      tpu.vector_store %arg11[%c0_71, %c0_72], %203 {strides = array<i32>} : memref<8x128xf32, #tpu.memory_space<vmem>>, vector<8x128xf32>,
    } else {
    }
    %c0 = arith.constant 0 : index
    %c0_1 = arith.constant 0 : index
    %3 = vector.load %arg1[%c0, %c0_1] : memref<64x12xf32, #tpu.memory_space<vmem>>, vector<64x12xf32>
    %c0_2 = arith.constant 0 : index
    %c0_3 = arith.constant 0 : index
    %4 = vector.load %arg2[%c0_2, %c0_3] : memref<12x512xf32, #tpu.memory_space<vmem>>, vector<12x512xf32>
    %cst = arith.constant dense<0.000000e+00> : vector<64x512xf32>
    %5 = tpu.matmul %3, %4, %cst {dimension_numbers = #tpu.dot_dimension_numbers<[1], [0], [0], [1], [0, 0, 1, 1], [], []>} : vector<64x12xf32>, vector<12x512xf32>, vector<64x512xf32> -> vector<64x512xf32>
    %c0_4 = arith.constant 0 : index
    %c0_5 = arith.constant 0 : index
    %6 = vector.load %arg3[%c0_4, %c0_5] : memref<1x512xf32, #tpu.memory_space<vmem>>, vector<1x512xf32>
    %7 = vector.broadcast %6 : vector<1x512xf32> to vector<64x512xf32>
    %8 = arith.addf %5, %7 : vector<64x512xf32>
    %c0_6 = arith.constant 0 : index
    %c0_7 = arith.constant 0 : index
    %9 = vector.load %arg12[%c0_6, %c0_7] : memref<64x512xf32, #tpu.memory_space<vmem>>, vector<64x512xf32>
    tpu.vector_store %arg12[%c0_6, %c0_7], %8 {strides = array<i32>} : memref<64x512xf32, #tpu.memory_space<vmem>>, vector<64x512xf32>,
    %c0_8 = arith.constant 0 : index
    %c0_9 = arith.constant 0 : index
    %10 = vector.load %arg10[%c0_8, %c0_9] : memref<8x128xf32, #tpu.memory_space<vmem>>, vector<8x128xf32>
    %c0_10 = arith.constant 0 : index
    %c0_11 = arith.constant 0 : index
    %11 = vector.load %arg11[%c0_10, %c0_11] : memref<8x128xf32, #tpu.memory_space<vmem>>, vector<8x128xf32>
    %c0_i32_12 = arith.constant 0 : i32
    %c8_i32 = arith.constant 8 : i32
    %12 = arith.muli %c0_i32_12, %c8_i32 : i32
    %13 = tpu.assume_multiple %12, 8 : i32
    %14 = arith.index_cast %13 : i32 to index
    %c0_13 = arith.constant 0 : index
    %15 = vector.load %arg12[%14, %c0_13] : memref<64x512xf32, #tpu.memory_space<vmem>>, vector<8x512xf32>
    %c0_14 = arith.constant 0 : index
    %c0_15 = arith.constant 0 : index
    %16 = vector.load %arg4[%c0_14, %c0_15] : memref<128x512xf32, #tpu.memory_space<vmem>>, vector<128x512xf32>
    %cst_16 = arith.constant dense<0.000000e+00> : vector<8x512xf32>
    %17 = tpu.matmul %10, %16, %cst_16 {dimension_numbers = #tpu.dot_dimension_numbers<[1], [0], [0], [1], [0, 0, 1, 1], [], []>} : vector<8x128xf32>, vector<128x512xf32>, vector<8x512xf32> -> vector<8x512xf32>
    %18 = arith.addf %15, %17 : vector<8x512xf32>
    %19 = vector.extract_strided_slice %18 {offsets = [0, 0], sizes = [8, 384], strides = [1, 1]} : vector<8x512xf32> to vector<8x384xf32>
    %20 = arith.negf %19 : vector<8x384xf32>
    %21 = math.exp %20 : vector<8x384xf32>
    %cst_17 = arith.constant 1.000000e+00 : f32
    %22 = vector.broadcast %cst_17 : f32 to vector<8x384xf32>
    %23 = arith.addf %22, %21 : vector<8x384xf32>
    %24 = arith.divf %22, %23 : vector<8x384xf32>
    %25 = vector.extract_strided_slice %18 {offsets = [0, 384], sizes = [8, 128], strides = [1, 1]} : vector<8x512xf32> to vector<8x128xf32>
    %26 = math.tanh %25 : vector<8x128xf32>
    %27 = vector.extract_strided_slice %24 {offsets = [0, 0], sizes = [8, 128], strides = [1, 1]} : vector<8x384xf32> to vector<8x128xf32>
    %28 = vector.extract_strided_slice %24 {offsets = [0, 128], sizes = [8, 128], strides = [1, 1]} : vector<8x384xf32> to vector<8x128xf32>
    %29 = vector.extract_strided_slice %24 {offsets = [0, 256], sizes = [8, 128], strides = [1, 1]} : vector<8x384xf32> to vector<8x128xf32>
    %30 = arith.mulf %28, %11 : vector<8x128xf32>
    %31 = arith.mulf %27, %26 : vector<8x128xf32>
    %32 = arith.addf %30, %31 : vector<8x128xf32>
    %33 = math.tanh %32 : vector<8x128xf32>
    %34 = arith.mulf %29, %33 : vector<8x128xf32>
    %c1_i32 = arith.constant 1 : i32
    %c8_i32_18 = arith.constant 8 : i32
    %35 = arith.muli %c1_i32, %c8_i32_18 : i32
    %36 = tpu.assume_multiple %35, 8 : i32
    %37 = arith.index_cast %36 : i32 to index
    %c0_19 = arith.constant 0 : index
    %38 = vector.load %arg12[%37, %c0_19] : memref<64x512xf32, #tpu.memory_space<vmem>>, vector<8x512xf32>
    %c0_20 = arith.constant 0 : index
    %c0_21 = arith.constant 0 : index
    %39 = vector.load %arg4[%c0_20, %c0_21] : memref<128x512xf32, #tpu.memory_space<vmem>>, vector<128x512xf32>
    %cst_22 = arith.constant dense<0.000000e+00> : vector<8x512xf32>
    %40 = tpu.matmul %34, %39, %cst_22 {dimension_numbers = #tpu.dot_dimension_numbers<[1], [0], [0], [1], [0, 0, 1, 1], [], []>} : vector<8x128xf32>, vector<128x512xf32>, vector<8x512xf32> -> vector<8x512xf32>
    %41 = arith.addf %38, %40 : vector<8x512xf32>
    %42 = vector.extract_strided_slice %41 {offsets = [0, 0], sizes = [8, 384], strides = [1, 1]} : vector<8x512xf32> to vector<8x384xf32>
    %43 = arith.negf %42 : vector<8x384xf32>
    %44 = math.exp %43 : vector<8x384xf32>
    %cst_23 = arith.constant 1.000000e+00 : f32
    %45 = vector.broadcast %cst_23 : f32 to vector<8x384xf32>
    %46 = arith.addf %45, %44 : vector<8x384xf32>
    %47 = arith.divf %45, %46 : vector<8x384xf32>
    %48 = vector.extract_strided_slice %41 {offsets = [0, 384], sizes = [8, 128], strides = [1, 1]} : vector<8x512xf32> to vector<8x128xf32>
    %49 = math.tanh %48 : vector<8x128xf32>
    %50 = vector.extract_strided_slice %47 {offsets = [0, 0], sizes = [8, 128], strides = [1, 1]} : vector<8x384xf32> to vector<8x128xf32>
    %51 = vector.extract_strided_slice %47 {offsets = [0, 128], sizes = [8, 128], strides = [1, 1]} : vector<8x384xf32> to vector<8x128xf32>
    %52 = vector.extract_strided_slice %47 {offsets = [0, 256], sizes = [8, 128], strides = [1, 1]} : vector<8x384xf32> to vector<8x128xf32>
    %53 = arith.mulf %51, %32 : vector<8x128xf32>
    %54 = arith.mulf %50, %49 : vector<8x128xf32>
    %55 = arith.addf %53, %54 : vector<8x128xf32>
    %56 = math.tanh %55 : vector<8x128xf32>
    %57 = arith.mulf %52, %56 : vector<8x128xf32>
    %c2_i32 = arith.constant 2 : i32
    %c8_i32_24 = arith.constant 8 : i32
    %58 = arith.muli %c2_i32, %c8_i32_24 : i32
    %59 = tpu.assume_multiple %58, 8 : i32
    %60 = arith.index_cast %59 : i32 to index
    %c0_25 = arith.constant 0 : index
    %61 = vector.load %arg12[%60, %c0_25] : memref<64x512xf32, #tpu.memory_space<vmem>>, vector<8x512xf32>
    %c0_26 = arith.constant 0 : index
    %c0_27 = arith.constant 0 : index
    %62 = vector.load %arg4[%c0_26, %c0_27] : memref<128x512xf32, #tpu.memory_space<vmem>>, vector<128x512xf32>
    %cst_28 = arith.constant dense<0.000000e+00> : vector<8x512xf32>
    %63 = tpu.matmul %57, %62, %cst_28 {dimension_numbers = #tpu.dot_dimension_numbers<[1], [0], [0], [1], [0, 0, 1, 1], [], []>} : vector<8x128xf32>, vector<128x512xf32>, vector<8x512xf32> -> vector<8x512xf32>
    %64 = arith.addf %61, %63 : vector<8x512xf32>
    %65 = vector.extract_strided_slice %64 {offsets = [0, 0], sizes = [8, 384], strides = [1, 1]} : vector<8x512xf32> to vector<8x384xf32>
    %66 = arith.negf %65 : vector<8x384xf32>
    %67 = math.exp %66 : vector<8x384xf32>
    %cst_29 = arith.constant 1.000000e+00 : f32
    %68 = vector.broadcast %cst_29 : f32 to vector<8x384xf32>
    %69 = arith.addf %68, %67 : vector<8x384xf32>
    %70 = arith.divf %68, %69 : vector<8x384xf32>
    %71 = vector.extract_strided_slice %64 {offsets = [0, 384], sizes = [8, 128], strides = [1, 1]} : vector<8x512xf32> to vector<8x128xf32>
    %72 = math.tanh %71 : vector<8x128xf32>
    %73 = vector.extract_strided_slice %70 {offsets = [0, 0], sizes = [8, 128], strides = [1, 1]} : vector<8x384xf32> to vector<8x128xf32>
    %74 = vector.extract_strided_slice %70 {offsets = [0, 128], sizes = [8, 128], strides = [1, 1]} : vector<8x384xf32> to vector<8x128xf32>
    %75 = vector.extract_strided_slice %70 {offsets = [0, 256], sizes = [8, 128], strides = [1, 1]} : vector<8x384xf32> to vector<8x128xf32>
    %76 = arith.mulf %74, %55 : vector<8x128xf32>
    %77 = arith.mulf %73, %72 : vector<8x128xf32>
    %78 = arith.addf %76, %77 : vector<8x128xf32>
    %79 = math.tanh %78 : vector<8x128xf32>
    %80 = arith.mulf %75, %79 : vector<8x128xf32>
    %c3_i32 = arith.constant 3 : i32
    %c8_i32_30 = arith.constant 8 : i32
    %81 = arith.muli %c3_i32, %c8_i32_30 : i32
    %82 = tpu.assume_multiple %81, 8 : i32
    %83 = arith.index_cast %82 : i32 to index
    %c0_31 = arith.constant 0 : index
    %84 = vector.load %arg12[%83, %c0_31] : memref<64x512xf32, #tpu.memory_space<vmem>>, vector<8x512xf32>
    %c0_32 = arith.constant 0 : index
    %c0_33 = arith.constant 0 : index
    %85 = vector.load %arg4[%c0_32, %c0_33] : memref<128x512xf32, #tpu.memory_space<vmem>>, vector<128x512xf32>
    %cst_34 = arith.constant dense<0.000000e+00> : vector<8x512xf32>
    %86 = tpu.matmul %80, %85, %cst_34 {dimension_numbers = #tpu.dot_dimension_numbers<[1], [0], [0], [1], [0, 0, 1, 1], [], []>} : vector<8x128xf32>, vector<128x512xf32>, vector<8x512xf32> -> vector<8x512xf32>
    %87 = arith.addf %84, %86 : vector<8x512xf32>
    %88 = vector.extract_strided_slice %87 {offsets = [0, 0], sizes = [8, 384], strides = [1, 1]} : vector<8x512xf32> to vector<8x384xf32>
    %89 = arith.negf %88 : vector<8x384xf32>
    %90 = math.exp %89 : vector<8x384xf32>
    %cst_35 = arith.constant 1.000000e+00 : f32
    %91 = vector.broadcast %cst_35 : f32 to vector<8x384xf32>
    %92 = arith.addf %91, %90 : vector<8x384xf32>
    %93 = arith.divf %91, %92 : vector<8x384xf32>
    %94 = vector.extract_strided_slice %87 {offsets = [0, 384], sizes = [8, 128], strides = [1, 1]} : vector<8x512xf32> to vector<8x128xf32>
    %95 = math.tanh %94 : vector<8x128xf32>
    %96 = vector.extract_strided_slice %93 {offsets = [0, 0], sizes = [8, 128], strides = [1, 1]} : vector<8x384xf32> to vector<8x128xf32>
    %97 = vector.extract_strided_slice %93 {offsets = [0, 128], sizes = [8, 128], strides = [1, 1]} : vector<8x384xf32> to vector<8x128xf32>
    %98 = vector.extract_strided_slice %93 {offsets = [0, 256], sizes = [8, 128], strides = [1, 1]} : vector<8x384xf32> to vector<8x128xf32>
    %99 = arith.mulf %97, %78 : vector<8x128xf32>
    %100 = arith.mulf %96, %95 : vector<8x128xf32>
    %101 = arith.addf %99, %100 : vector<8x128xf32>
    %102 = math.tanh %101 : vector<8x128xf32>
    %103 = arith.mulf %98, %102 : vector<8x128xf32>
    %c4_i32 = arith.constant 4 : i32
    %c8_i32_36 = arith.constant 8 : i32
    %104 = arith.muli %c4_i32, %c8_i32_36 : i32
    %105 = tpu.assume_multiple %104, 8 : i32
    %106 = arith.index_cast %105 : i32 to index
    %c0_37 = arith.constant 0 : index
    %107 = vector.load %arg12[%106, %c0_37] : memref<64x512xf32, #tpu.memory_space<vmem>>, vector<8x512xf32>
    %c0_38 = arith.constant 0 : index
    %c0_39 = arith.constant 0 : index
    %108 = vector.load %arg4[%c0_38, %c0_39] : memref<128x512xf32, #tpu.memory_space<vmem>>, vector<128x512xf32>
    %cst_40 = arith.constant dense<0.000000e+00> : vector<8x512xf32>
    %109 = tpu.matmul %103, %108, %cst_40 {dimension_numbers = #tpu.dot_dimension_numbers<[1], [0], [0], [1], [0, 0, 1, 1], [], []>} : vector<8x128xf32>, vector<128x512xf32>, vector<8x512xf32> -> vector<8x512xf32>
    %110 = arith.addf %107, %109 : vector<8x512xf32>
    %111 = vector.extract_strided_slice %110 {offsets = [0, 0], sizes = [8, 384], strides = [1, 1]} : vector<8x512xf32> to vector<8x384xf32>
    %112 = arith.negf %111 : vector<8x384xf32>
    %113 = math.exp %112 : vector<8x384xf32>
    %cst_41 = arith.constant 1.000000e+00 : f32
    %114 = vector.broadcast %cst_41 : f32 to vector<8x384xf32>
    %115 = arith.addf %114, %113 : vector<8x384xf32>
    %116 = arith.divf %114, %115 : vector<8x384xf32>
    %117 = vector.extract_strided_slice %110 {offsets = [0, 384], sizes = [8, 128], strides = [1, 1]} : vector<8x512xf32> to vector<8x128xf32>
    %118 = math.tanh %117 : vector<8x128xf32>
    %119 = vector.extract_strided_slice %116 {offsets = [0, 0], sizes = [8, 128], strides = [1, 1]} : vector<8x384xf32> to vector<8x128xf32>
    %120 = vector.extract_strided_slice %116 {offsets = [0, 128], sizes = [8, 128], strides = [1, 1]} : vector<8x384xf32> to vector<8x128xf32>
    %121 = vector.extract_strided_slice %116 {offsets = [0, 256], sizes = [8, 128], strides = [1, 1]} : vector<8x384xf32> to vector<8x128xf32>
    %122 = arith.mulf %120, %101 : vector<8x128xf32>
    %123 = arith.mulf %119, %118 : vector<8x128xf32>
    %124 = arith.addf %122, %123 : vector<8x128xf32>
    %125 = math.tanh %124 : vector<8x128xf32>
    %126 = arith.mulf %121, %125 : vector<8x128xf32>
    %c5_i32 = arith.constant 5 : i32
    %c8_i32_42 = arith.constant 8 : i32
    %127 = arith.muli %c5_i32, %c8_i32_42 : i32
    %128 = tpu.assume_multiple %127, 8 : i32
    %129 = arith.index_cast %128 : i32 to index
    %c0_43 = arith.constant 0 : index
    %130 = vector.load %arg12[%129, %c0_43] : memref<64x512xf32, #tpu.memory_space<vmem>>, vector<8x512xf32>
    %c0_44 = arith.constant 0 : index
    %c0_45 = arith.constant 0 : index
    %131 = vector.load %arg4[%c0_44, %c0_45] : memref<128x512xf32, #tpu.memory_space<vmem>>, vector<128x512xf32>
    %cst_46 = arith.constant dense<0.000000e+00> : vector<8x512xf32>
    %132 = tpu.matmul %126, %131, %cst_46 {dimension_numbers = #tpu.dot_dimension_numbers<[1], [0], [0], [1], [0, 0, 1, 1], [], []>} : vector<8x128xf32>, vector<128x512xf32>, vector<8x512xf32> -> vector<8x512xf32>
    %133 = arith.addf %130, %132 : vector<8x512xf32>
    %134 = vector.extract_strided_slice %133 {offsets = [0, 0], sizes = [8, 384], strides = [1, 1]} : vector<8x512xf32> to vector<8x384xf32>
    %135 = arith.negf %134 : vector<8x384xf32>
    %136 = math.exp %135 : vector<8x384xf32>
    %cst_47 = arith.constant 1.000000e+00 : f32
    %137 = vector.broadcast %cst_47 : f32 to vector<8x384xf32>
    %138 = arith.addf %137, %136 : vector<8x384xf32>
    %139 = arith.divf %137, %138 : vector<8x384xf32>
    %140 = vector.extract_strided_slice %133 {offsets = [0, 384], sizes = [8, 128], strides = [1, 1]} : vector<8x512xf32> to vector<8x128xf32>
    %141 = math.tanh %140 : vector<8x128xf32>
    %142 = vector.extract_strided_slice %139 {offsets = [0, 0], sizes = [8, 128], strides = [1, 1]} : vector<8x384xf32> to vector<8x128xf32>
    %143 = vector.extract_strided_slice %139 {offsets = [0, 128], sizes = [8, 128], strides = [1, 1]} : vector<8x384xf32> to vector<8x128xf32>
    %144 = vector.extract_strided_slice %139 {offsets = [0, 256], sizes = [8, 128], strides = [1, 1]} : vector<8x384xf32> to vector<8x128xf32>
    %145 = arith.mulf %143, %124 : vector<8x128xf32>
    %146 = arith.mulf %142, %141 : vector<8x128xf32>
    %147 = arith.addf %145, %146 : vector<8x128xf32>
    %148 = math.tanh %147 : vector<8x128xf32>
    %149 = arith.mulf %144, %148 : vector<8x128xf32>
    %c6_i32 = arith.constant 6 : i32
    %c8_i32_48 = arith.constant 8 : i32
    %150 = arith.muli %c6_i32, %c8_i32_48 : i32
    %151 = tpu.assume_multiple %150, 8 : i32
    %152 = arith.index_cast %151 : i32 to index
    %c0_49 = arith.constant 0 : index
    %153 = vector.load %arg12[%152, %c0_49] : memref<64x512xf32, #tpu.memory_space<vmem>>, vector<8x512xf32>
    %c0_50 = arith.constant 0 : index
    %c0_51 = arith.constant 0 : index
    %154 = vector.load %arg4[%c0_50, %c0_51] : memref<128x512xf32, #tpu.memory_space<vmem>>, vector<128x512xf32>
    %cst_52 = arith.constant dense<0.000000e+00> : vector<8x512xf32>
    %155 = tpu.matmul %149, %154, %cst_52 {dimension_numbers = #tpu.dot_dimension_numbers<[1], [0], [0], [1], [0, 0, 1, 1], [], []>} : vector<8x128xf32>, vector<128x512xf32>, vector<8x512xf32> -> vector<8x512xf32>
    %156 = arith.addf %153, %155 : vector<8x512xf32>
    %157 = vector.extract_strided_slice %156 {offsets = [0, 0], sizes = [8, 384], strides = [1, 1]} : vector<8x512xf32> to vector<8x384xf32>
    %158 = arith.negf %157 : vector<8x384xf32>
    %159 = math.exp %158 : vector<8x384xf32>
    %cst_53 = arith.constant 1.000000e+00 : f32
    %160 = vector.broadcast %cst_53 : f32 to vector<8x384xf32>
    %161 = arith.addf %160, %159 : vector<8x384xf32>
    %162 = arith.divf %160, %161 : vector<8x384xf32>
    %163 = vector.extract_strided_slice %156 {offsets = [0, 384], sizes = [8, 128], strides = [1, 1]} : vector<8x512xf32> to vector<8x128xf32>
    %164 = math.tanh %163 : vector<8x128xf32>
    %165 = vector.extract_strided_slice %162 {offsets = [0, 0], sizes = [8, 128], strides = [1, 1]} : vector<8x384xf32> to vector<8x128xf32>
    %166 = vector.extract_strided_slice %162 {offsets = [0, 128], sizes = [8, 128], strides = [1, 1]} : vector<8x384xf32> to vector<8x128xf32>
    %167 = vector.extract_strided_slice %162 {offsets = [0, 256], sizes = [8, 128], strides = [1, 1]} : vector<8x384xf32> to vector<8x128xf32>
    %168 = arith.mulf %166, %147 : vector<8x128xf32>
    %169 = arith.mulf %165, %164 : vector<8x128xf32>
    %170 = arith.addf %168, %169 : vector<8x128xf32>
    %171 = math.tanh %170 : vector<8x128xf32>
    %172 = arith.mulf %167, %171 : vector<8x128xf32>
    %c7_i32 = arith.constant 7 : i32
    %c8_i32_54 = arith.constant 8 : i32
    %173 = arith.muli %c7_i32, %c8_i32_54 : i32
    %174 = tpu.assume_multiple %173, 8 : i32
    %175 = arith.index_cast %174 : i32 to index
    %c0_55 = arith.constant 0 : index
    %176 = vector.load %arg12[%175, %c0_55] : memref<64x512xf32, #tpu.memory_space<vmem>>, vector<8x512xf32>
    %c0_56 = arith.constant 0 : index
    %c0_57 = arith.constant 0 : index
    %177 = vector.load %arg4[%c0_56, %c0_57] : memref<128x512xf32, #tpu.memory_space<vmem>>, vector<128x512xf32>
    %cst_58 = arith.constant dense<0.000000e+00> : vector<8x512xf32>
    %178 = tpu.matmul %172, %177, %cst_58 {dimension_numbers = #tpu.dot_dimension_numbers<[1], [0], [0], [1], [0, 0, 1, 1], [], []>} : vector<8x128xf32>, vector<128x512xf32>, vector<8x512xf32> -> vector<8x512xf32>
    %179 = arith.addf %176, %178 : vector<8x512xf32>
    %180 = vector.extract_strided_slice %179 {offsets = [0, 0], sizes = [8, 384], strides = [1, 1]} : vector<8x512xf32> to vector<8x384xf32>
    %181 = arith.negf %180 : vector<8x384xf32>
    %182 = math.exp %181 : vector<8x384xf32>
    %cst_59 = arith.constant 1.000000e+00 : f32
    %183 = vector.broadcast %cst_59 : f32 to vector<8x384xf32>
    %184 = arith.addf %183, %182 : vector<8x384xf32>
    %185 = arith.divf %183, %184 : vector<8x384xf32>
    %186 = vector.extract_strided_slice %179 {offsets = [0, 384], sizes = [8, 128], strides = [1, 1]} : vector<8x512xf32> to vector<8x128xf32>
    %187 = math.tanh %186 : vector<8x128xf32>
    %188 = vector.extract_strided_slice %185 {offsets = [0, 0], sizes = [8, 128], strides = [1, 1]} : vector<8x384xf32> to vector<8x128xf32>
    %189 = vector.extract_strided_slice %185 {offsets = [0, 128], sizes = [8, 128], strides = [1, 1]} : vector<8x384xf32> to vector<8x128xf32>
    %190 = vector.extract_strided_slice %185 {offsets = [0, 256], sizes = [8, 128], strides = [1, 1]} : vector<8x384xf32> to vector<8x128xf32>
    %191 = arith.mulf %189, %170 : vector<8x128xf32>
    %192 = arith.mulf %188, %187 : vector<8x128xf32>
    %193 = arith.addf %191, %192 : vector<8x128xf32>
    %194 = math.tanh %193 : vector<8x128xf32>
    %195 = arith.mulf %190, %194 : vector<8x128xf32>
    %c8_i32_60 = arith.constant 8 : i32
    %c0_61 = arith.constant 0 : index
    %c0_62 = arith.constant 0 : index
    %196 = vector.load %arg10[%c0_61, %c0_62] : memref<8x128xf32, #tpu.memory_space<vmem>>, vector<8x128xf32>
    tpu.vector_store %arg10[%c0_61, %c0_62], %195 {strides = array<i32>} : memref<8x128xf32, #tpu.memory_space<vmem>>, vector<8x128xf32>,
    %c0_63 = arith.constant 0 : index
    %c0_64 = arith.constant 0 : index
    %197 = vector.load %arg11[%c0_63, %c0_64] : memref<8x128xf32, #tpu.memory_space<vmem>>, vector<8x128xf32>
    tpu.vector_store %arg11[%c0_63, %c0_64], %193 {strides = array<i32>} : memref<8x128xf32, #tpu.memory_space<vmem>>, vector<8x128xf32>,
    %c0_i32_65 = arith.constant 0 : i32
    %198 = arith.cmpi eq, %arg0, %c0_i32_65 : i32
    %199 = arith.extui %198 : i1 to i32
    %c0_i32_66 = arith.constant 0 : i32
    %200 = arith.cmpi ne, %199, %c0_i32_66 : i32
    scf.if %200 {
      %c0_67 = arith.constant 0 : index
      %c0_68 = arith.constant 0 : index
      %201 = vector.load %arg5[%c0_67, %c0_68] : memref<128x128xf32, #tpu.memory_space<vmem>>, vector<128x128xf32>
      %cst_69 = arith.constant dense<0.000000e+00> : vector<8x128xf32>
      %202 = tpu.matmul %195, %201, %cst_69 {dimension_numbers = #tpu.dot_dimension_numbers<[1], [0], [0], [1], [0, 0, 1, 1], [], []>} : vector<8x128xf32>, vector<128x128xf32>, vector<8x128xf32> -> vector<8x128xf32>
      %c0_70 = arith.constant 0 : index
      %c0_71 = arith.constant 0 : index
      %203 = vector.load %arg6[%c0_70, %c0_71] : memref<1x128xf32, #tpu.memory_space<vmem>>, vector<1x128xf32>
      %204 = vector.broadcast %203 : vector<1x128xf32> to vector<8x128xf32>
      %205 = arith.addf %202, %204 : vector<8x128xf32>
      %206 = math.tanh %205 : vector<8x128xf32>
      %c0_72 = arith.constant 0 : index
      %c0_73 = arith.constant 0 : index
      %207 = vector.load %arg7[%c0_72, %c0_73] : memref<128x3xf32, #tpu.memory_space<vmem>>, vector<128x3xf32>
      %cst_74 = arith.constant dense<0.000000e+00> : vector<8x3xf32>
      %208 = tpu.matmul %206, %207, %cst_74 {dimension_numbers = #tpu.dot_dimension_numbers<[1], [0], [0], [1], [0, 0, 1, 1], [], []>} : vector<8x128xf32>, vector<128x3xf32>, vector<8x3xf32> -> vector<8x3xf32>
      %c0_75 = arith.constant 0 : index
      %c0_76 = arith.constant 0 : index
      %209 = vector.load %arg8[%c0_75, %c0_76] : memref<1x3xf32, #tpu.memory_space<vmem>>, vector<1x3xf32>
      %210 = vector.broadcast %209 : vector<1x3xf32> to vector<8x3xf32>
      %211 = arith.addf %208, %210 : vector<8x3xf32>
      %212 = math.tanh %211 : vector<8x3xf32>
      %c0_77 = arith.constant 0 : index
      %c0_78 = arith.constant 0 : index
      %213 = vector.load %arg9[%c0_77, %c0_78] : memref<8x3xf32, #tpu.memory_space<vmem>>, vector<8x3xf32>
      tpu.vector_store %arg9[%c0_77, %c0_78], %212 {strides = array<i32>} : memref<8x3xf32, #tpu.memory_space<vmem>>, vector<8x3xf32>,
    } else {
    }
    return
  }
  func.func @transform_0(%arg0: i32) -> (i32, i32) {
    %c0_i32 = arith.constant 0 : i32
    %c0_i32_0 = arith.constant 0 : i32
    return %arg0, %c0_i32 : i32, i32
  }
  func.func @transform_1(%arg0: i32) -> (i32, i32) {
    %c0_i32 = arith.constant 0 : i32
    %c0_i32_0 = arith.constant 0 : i32
    %c0_i32_1 = arith.constant 0 : i32
    return %c0_i32, %c0_i32_0 : i32, i32
  }
  func.func @transform_2(%arg0: i32) -> (i32, i32) {
    %c0_i32 = arith.constant 0 : i32
    %c0_i32_0 = arith.constant 0 : i32
    %c0_i32_1 = arith.constant 0 : i32
    return %c0_i32, %c0_i32_0 : i32, i32
  }
  func.func @transform_3(%arg0: i32) -> (i32, i32) {
    %c0_i32 = arith.constant 0 : i32
    %c0_i32_0 = arith.constant 0 : i32
    %c0_i32_1 = arith.constant 0 : i32
    return %c0_i32, %c0_i32_0 : i32, i32
  }
  func.func @transform_4(%arg0: i32) -> (i32, i32) {
    %c0_i32 = arith.constant 0 : i32
    %c0_i32_0 = arith.constant 0 : i32
    %c0_i32_1 = arith.constant 0 : i32
    return %c0_i32, %c0_i32_0 : i32, i32
  }
  func.func @transform_5(%arg0: i32) -> (i32, i32) {
    %c0_i32 = arith.constant 0 : i32
    %c0_i32_0 = arith.constant 0 : i32
    %c0_i32_1 = arith.constant 0 : i32
    return %c0_i32, %c0_i32_0 : i32, i32
  }
  func.func @transform_6(%arg0: i32) -> (i32, i32) {
    %c0_i32 = arith.constant 0 : i32
    %c0_i32_0 = arith.constant 0 : i32
    %c0_i32_1 = arith.constant 0 : i32
    return %c0_i32, %c0_i32_0 : i32, i32
  }
  func.func @transform_7(%arg0: i32) -> (i32, i32) {
    %c0_i32 = arith.constant 0 : i32
    %c0_i32_0 = arith.constant 0 : i32
    %c0_i32_1 = arith.constant 0 : i32
    return %c0_i32, %c0_i32_0 : i32, i32
  }
  func.func @transform_8(%arg0: i32) -> (i32, i32) {
    %c0_i32 = arith.constant 0 : i32
    %c0_i32_0 = arith.constant 0 : i32
    %c0_i32_1 = arith.constant 0 : i32
    return %c0_i32, %c0_i32_0 : i32, i32
  }
}

</mosaic_0001>

<llo_original>
// kernel: tpu_custom_call.1
$region0: #{tpu_custom_call.1}
  #allocation0 [shape = 'u32[]', space=smem, size = 0x4, offset = 0x4, fixed_abs, tag = 'smem constant byte address 0x4 - core index']
  #allocation1 [shape = 'u32[144,128]{1,0:T(1,128)}', space=vmem, size = 0x12000, scoped, tag = 'internal scratch']
  #allocation2 [shape = 'f32[8,128]{1,0:T(8,128)}', space=vmem, size = 0x1000, scoped, tag = 'scratch operand']
  #allocation3 [shape = 'f32[8,128]{1,0:T(8,128)}', space=vmem, size = 0x1000, scoped, tag = 'scratch operand']
  #allocation4 [shape = 'f32[64,512]{1,0:T(8,128)}', space=vmem, size = 0x20000, scoped, tag = 'scratch operand']
  %s0 = inlined_call_operand.vmem [shape: f32[64,12], index: 0, kind: input, shape index: {}]
  %s1 = inlined_call_operand.vmem [shape: f32[12,512], index: 1, kind: input, shape index: {}]
  %s2 = inlined_call_operand.vmem [shape: f32[1,512], index: 2, kind: input, shape index: {}]
  %s3 = inlined_call_operand.hbm [shape: f32[128,512], index: 3, kind: input, shape index: {}]
  %s4 = inlined_call_operand.vmem [shape: f32[128,128], index: 4, kind: input, shape index: {}]
  %s5 = inlined_call_operand.vmem [shape: f32[1,128], index: 5, kind: input, shape index: {}]
  %s6 = inlined_call_operand.vmem [shape: f32[128,3], index: 6, kind: input, shape index: {}]
  %s7 = inlined_call_operand.vmem [shape: f32[1,3], index: 7, kind: input, shape index: {}]
  %s8 = inlined_call_operand.vmem [shape: f32[8,3], index: 8, kind: output, shape index: {}]
  %s9 = sld [smem:[#allocation0]]
  $region54: #{tpu_custom_call.1} parent=0
    _
  %s11 = ssub.s32 1, %s9
  %s12 = scalar_select 0, %s11, %s9
  $region1: #{tpu_custom_call.1} parent=0
    #allocation5 [shape = 'u8[262144]{0}', space=vmem, size = 0x40000, scoped, tag = 'input window, operand 3, single buffered']
    #allocation6 [shape = 's32[1]{0}', space=sflag, size = 0x4, scoped, tag = 'scoped memory for tpu_custom_call.1']
    %13 = vsyncpa [#allocation6], 0
    // Predicated region
    $region2: #{tpu_custom_call.1} parent=1 // pred_check
      _
    $region3: #{tpu_custom_call.1} parent=1 // pred_check_branch
      %15 = sbr.rel (0) target = $region5
    $region4: #{tpu_custom_call.1} parent=1 // pred_region
      _
    $region5: #{tpu_custom_call.1} parent=1 // pred_fallthru
      _
    // Predicated region
    $region6: #{tpu_custom_call.1} parent=1 // pred_check
      _
    $region7: #{tpu_custom_call.1} parent=1 // pred_check_branch
      %17 = sbr.rel (0) target = $region9
    $region8: #{tpu_custom_call.1} parent=1 // pred_region
      _
    $region9: #{tpu_custom_call.1} parent=1 // pred_fallthru
      _
    // Predicated region
    $region10: #{tpu_custom_call.1} parent=1 // pred_check
      _
    $region11: #{tpu_custom_call.1} parent=1 // pred_check_branch
      %19 = sbr.rel (0) target = $region13
    $region12: #{tpu_custom_call.1} parent=1 // pred_region
      _
    $region13: #{tpu_custom_call.1} parent=1 // pred_fallthru
      _
    // Predicated region
    $region14: #{tpu_custom_call.1} parent=1 // pred_check
      _
    $region15: #{tpu_custom_call.1} parent=1 // pred_check_branch
      %21 = sbr.rel (0) target = $region17
    $region16: #{tpu_custom_call.1} parent=1 // pred_region
      %s23 = ssub.s32 8192, 8192
      %24 = vsyncadd [#allocation6], %s23
      %s25 = sshll.u32 [#allocation5], 4
      %s26 = int_to_ptr.vmem [resolvable:$true] %s25
      %31 = dma.hbm_to_vmem [thread:$0]  %s3, 8192, %s26, [#allocation6], 512, 512, 32
    $region17: #{tpu_custom_call.1} parent=1 // pred_fallthru
      _
    // Predicated region
    $region18: #{tpu_custom_call.1} parent=1 // pred_check
      _
    $region19: #{tpu_custom_call.1} parent=1 // pred_check_branch
      %33 = sbr.rel (0) target = $region21
    $region20: #{tpu_custom_call.1} parent=1 // pred_region
      _
    $region21: #{tpu_custom_call.1} parent=1 // pred_fallthru
      _
    // Predicated region
    $region22: #{tpu_custom_call.1} parent=1 // pred_check
      _
    $region23: #{tpu_custom_call.1} parent=1 // pred_check_branch
      %35 = sbr.rel (0) target = $region25
    $region24: #{tpu_custom_call.1} parent=1 // pred_region
      _
    $region25: #{tpu_custom_call.1} parent=1 // pred_fallthru
      _
    // Predicated region
    $region26: #{tpu_custom_call.1} parent=1 // pred_check
      _
    $region27: #{tpu_custom_call.1} parent=1 // pred_check_branch
      %37 = sbr.rel (0) target = $region29
    $region28: #{tpu_custom_call.1} parent=1 // pred_region
      _
    $region29: #{tpu_custom_call.1} parent=1 // pred_fallthru
      _
    // Predicated region
    $region30: #{tpu_custom_call.1} parent=1 // pred_check
      _
    $region31: #{tpu_custom_call.1} parent=1 // pred_check_branch
      %39 = sbr.rel (0) target = $region33
    $region32: #{tpu_custom_call.1} parent=1 // pred_region
      _
    $region33: #{tpu_custom_call.1} parent=1 // pred_fallthru
      _
    // Predicated region
    $region34: #{tpu_custom_call.1} parent=1 // pred_check
      _
    $region35: #{tpu_custom_call.1} parent=1 // pred_check_branch
      %41 = sbr.rel (0) target = $region37
    $region36: #{tpu_custom_call.1} parent=1 // pred_region
      %42 = dma.done [#allocation6], 8192
    $region37: #{tpu_custom_call.1} parent=1 // pred_fallthru
      _
    %p43 = scmp.eq.s32.totalorder 0, 0
    // Predicated region
    $region38: #{tpu_custom_call.1} parent=1 // pred_check
      %p44 = pneg %p43
    $region39: #{tpu_custom_call.1} parent=1 // pred_check_branch
      %46 = sbr.rel (%p44) target = $region41
    $region40: #{tpu_custom_call.1} parent=1 // pred_region
      %47 = vst [vmem:[#allocation2] sm:$0xff] 0.0
      %48 = vst [vmem:[#allocation3] sm:$0xff] 0.0
    $region41: #{tpu_custom_call.1} parent=1 // pred_fallthru
      _
    %v49 = vld [vmem:[%s0] sm:$0xff]
    %v50 = vld [vmem:[%s0 + $0x8] sm:$0xff]
    %v51 = vld [vmem:[%s0 + $0x10] sm:$0xff]
    %v52 = vld [vmem:[%s0 + $0x18] sm:$0xff]
    %v53 = vld [vmem:[%s0 + $0x20] sm:$0xff]
    %v54 = vld [vmem:[%s0 + $0x28] sm:$0xff]
    %v55 = vld [vmem:[%s0 + $0x30] sm:$0xff]
    %v56 = vld [vmem:[%s0 + $0x38] sm:$0xff]
    %v57 = vld [vmem:[%s1] sm:$0xff]
    %v58 = vld [vmem:[%s1 + $0x8] sm:$0xff]
    %v59 = vld [vmem:[%s1 + $0x10] sm:$0xff]
    %v60 = vld [vmem:[%s1 + $0x18] sm:$0xff]
    %v61 = vld [vmem:[%s1 + $0x20] sm:$0xf]
    %v62 = vld [vmem:[%s1 + $0x28] sm:$0xf]
    %v63 = vld [vmem:[%s1 + $0x30] sm:$0xf]
    %v64 = vld [vmem:[%s1 + $0x38] sm:$0xf]
    %v65 = vld [vmem:[%s2] sm:$0xf]
    %v67 = vlaneseq
    %v68 = vshrl.u32 %v67, 7
    %v69 = vsub.s32 0, %v68
    %v70 = vrot.slane %v65, %v69
    %v71 = vlaneseq
    %v72 = vshrl.u32 %v71, 7
    %v73 = vsub.s32 1, %v72
    %v74 = vrot.slane %v65, %v73
    %v75 = vlaneseq
    %v76 = vshrl.u32 %v75, 7
    %v77 = vsub.s32 2, %v76
    %v78 = vrot.slane %v65, %v77
    %v79 = vlaneseq
    %v80 = vshrl.u32 %v79, 7
    %v81 = vsub.s32 3, %v80
    %v82 = vrot.slane %v65, %v81
    %vm87 = vcmask 97280
    %v89 = vsel %vm87, %v49, 0
    %v92 = vsel %vm87, %v50, 0
    %v95 = vsel %vm87, %v51, 0
    %v98 = vsel %vm87, %v52, 0
    %v101 = vsel %vm87, %v53, 0
    %v104 = vsel %vm87, %v54, 0
    %v107 = vsel %vm87, %v55, 0
    %v110 = vsel %vm87, %v56, 0
    %vm112 = vcmask 1043456
    %v114 = vsel %vm112, %v61, 0
    %v117 = vsel %vm112, %v62, 0
    %v120 = vsel %vm112, %v63, 0
    %v123 = vsel %vm112, %v64, 0
    %125 = vmatprep.subr.mxu0 %v58
    %126 = vmatpush1.msra.mxu0 %v57
    %127 = vmatprep.subr.mxu0 %v117
    %128 = vmatpush1.msra.mxu0 %v114
    %129 = vmatprep.subr.mxu0 0.0
    %130 = vmatpush1.msra.mxu0 0.0
    %131 = vmatprep.subr.mxu0 0.0
    %132 = vmatpush1.msra.mxu0 0.0
    %133 = vmatprep.subr.mxu0 0.0
    %134 = vmatpush1.msra.mxu0 0.0
    %135 = vmatprep.subr.mxu0 0.0
    %136 = vmatpush1.msra.mxu0 0.0
    %137 = vmatprep.subr.mxu0 0.0
    %138 = vmatpush1.msra.mxu0 0.0
    %139 = vmatprep.subr.mxu0 0.0
    %140 = vmatpush1.msra.mxu0 0.0
    %141 = vmatprep.subr.mxu0 0.0
    %142 = vmatpush1.msra.mxu0 0.0
    %143 = vmatprep.subr.mxu0 0.0
    %144 = vmatpush1.msra.mxu0 0.0
    %145 = vmatprep.subr.mxu0 0.0
    %146 = vmatpush1.msra.mxu0 0.0
    %147 = vmatprep.subr.mxu0 0.0
    %148 = vmatpush1.msra.mxu0 0.0
    %149 = vmatprep.subr.mxu0 0.0
    %150 = vmatpush1.msra.mxu0 0.0
    %151 = vmatprep.subr.mxu0 0.0
    %152 = vmatpush1.msra.mxu0 0.0
    %153 = vmatprep.subr.mxu0 0.0
    %154 = vmatpush1.msra.mxu0 0.0
    %155 = vmatprep.subr.mxu0 0.0
    %156 = vmatpush1.msra.mxu0 0.0
    %157 = vmatprep.subr.mxu0 0.0
    %158 = vmatpush1.msra.mxu0 0.0
    %159 = vmatprep.subr.mxu0 0.0
    %160 = vmatpush1.msra.mxu0 0.0
    %161 = vmatprep.subr.mxu0 0.0
    %162 = vmatpush1.msra.mxu0 0.0
    %163 = vmatprep.subr.mxu0 0.0
    %164 = vmatpush1.msra.mxu0 0.0
    %165 = vmatprep.subr.mxu0 0.0
    %166 = vmatpush1.msra.mxu0 0.0
    %167 = vmatprep.subr.mxu0 0.0
    %168 = vmatpush1.msra.mxu0 0.0
    %169 = vmatprep.subr.mxu0 0.0
    %170 = vmatpush1.msra.mxu0 0.0
    %171 = vmatprep.subr.mxu0 0.0
    %172 = vmatpush1.msra.mxu0 0.0
    %173 = vmatprep.subr.mxu0 0.0
    %174 = vmatpush1.msra.mxu0 0.0
    %175 = vmatprep.subr.mxu0 0.0
    %176 = vmatpush1.msra.mxu0 0.0
    %177 = vmatprep.subr.mxu0 0.0
    %178 = vmatpush1.msra.mxu0 0.0
    %179 = vmatprep.subr.mxu0 0.0
    %180 = vmatpush1.msra.mxu0 0.0
    %181 = vmatprep.subr.mxu0 0.0
    %182 = vmatpush1.msra.mxu0 0.0
    %183 = vmatprep.subr.mxu0 0.0
    %184 = vmatpush1.msra.mxu0 0.0
    %185 = vmatprep.subr.mxu0 0.0
    %186 = vmatpush1.msra.mxu0 0.0
    %187 = vmatprep.subr.mxu0 0.0
    %188 = vmatpush1.msra.mxu0 0.0
    %189 = vmatprep.mubr.f32.mxu0 0.0
    %190 = vmatmul.mubr.f32.gmra.mrb[0].mxu0 %v89
    %v191 = vpop.f32.mrb[0].mxu0
    %v192 = vadd.f32 %v70, %v191
    %v193 = vpop.f32.mrb[0].mxu0
    %v194 = vadd.f32 %v74, %v193
    %195 = vmatprep.mubr.f32.mxu0 0.0
    %196 = vmatmul.mubr.f32.gmra.mrb[0].mxu0 %v92
    %v197 = vpop.f32.mrb[0].mxu0
    %v198 = vadd.f32 %v70, %v197
    %v199 = vpop.f32.mrb[0].mxu0
    %v200 = vadd.f32 %v74, %v199
    %201 = vmatprep.mubr.f32.mxu0 0.0
    %202 = vmatmul.mubr.f32.gmra.mrb[0].mxu0 %v95
    %v203 = vpop.f32.mrb[0].mxu0
    %v204 = vadd.f32 %v70, %v203
    %v205 = vpop.f32.mrb[0].mxu0
    %v206 = vadd.f32 %v74, %v205
    %207 = vmatprep.mubr.f32.mxu0 0.0
    %208 = vmatmul.mubr.f32.gmra.mrb[0].mxu0 %v98
    %v209 = vpop.f32.mrb[0].mxu0
    %v210 = vadd.f32 %v70, %v209
    %v211 = vpop.f32.mrb[0].mxu0
    %v212 = vadd.f32 %v74, %v211
    %213 = vmatprep.mubr.f32.mxu0 0.0
    %214 = vmatmul.mubr.f32.gmra.mrb[0].mxu0 %v101
    %v215 = vpop.f32.mrb[0].mxu0
    %v216 = vadd.f32 %v70, %v215
    %v217 = vpop.f32.mrb[0].mxu0
    %v218 = vadd.f32 %v74, %v217
    %219 = vmatprep.mubr.f32.mxu0 0.0
    %220 = vmatmul.mubr.f32.gmra.mrb[0].mxu0 %v104
    %v221 = vpop.f32.mrb[0].mxu0
    %v222 = vadd.f32 %v70, %v221
    %v223 = vpop.f32.mrb[0].mxu0
    %v224 = vadd.f32 %v74, %v223
    %225 = vmatprep.mubr.f32.mxu0 0.0
    %226 = vmatmul.mubr.f32.gmra.mrb[0].mxu0 %v107
    %v227 = vpop.f32.mrb[0].mxu0
    %v228 = vadd.f32 %v70, %v227
    %v229 = vpop.f32.mrb[0].mxu0
    %v230 = vadd.f32 %v74, %v229
    %231 = vmatprep.mubr.f32.mxu0 0.0
    %232 = vmatmul.mubr.f32.gmra.mrb[0].mxu0 %v110
    %v233 = vpop.f32.mrb[0].mxu0
    %v234 = vadd.f32 %v70, %v233
    %v235 = vpop.f32.mrb[0].mxu0
    %v236 = vadd.f32 %v74, %v235
    %237 = vdwg.mxu0
    %238 = vmatprep.subr.mxu0 %v60
    %239 = vmatpush1.msra.mxu0 %v59
    %240 = vmatprep.subr.mxu0 %v123
    %241 = vmatpush1.msra.mxu0 %v120
    %242 = vmatprep.subr.mxu0 0.0
    %243 = vmatpush1.msra.mxu0 0.0
    %244 = vmatprep.subr.mxu0 0.0
    %245 = vmatpush1.msra.mxu0 0.0
    %246 = vmatprep.subr.mxu0 0.0
    %247 = vmatpush1.msra.mxu0 0.0
    %248 = vmatprep.subr.mxu0 0.0
    %249 = vmatpush1.msra.mxu0 0.0
    %250 = vmatprep.subr.mxu0 0.0
    %251 = vmatpush1.msra.mxu0 0.0
    %252 = vmatprep.subr.mxu0 0.0
    %253 = vmatpush1.msra.mxu0 0.0
    %254 = vmatprep.subr.mxu0 0.0
    %255 = vmatpush1.msra.mxu0 0.0
    %256 = vmatprep.subr.mxu0 0.0
    %257 = vmatpush1.msra.mxu0 0.0
    %258 = vmatprep.subr.mxu0 0.0
    %259 = vmatpush1.msra.mxu0 0.0
    %260 = vmatprep.subr.mxu0 0.0
    %261 = vmatpush1.msra.mxu0 0.0
    %262 = vmatprep.subr.mxu0 0.0
    %263 = vmatpush1.msra.mxu0 0.0
    %264 = vmatprep.subr.mxu0 0.0
    %265 = vmatpush1.msra.mxu0 0.0
    %266 = vmatprep.subr.mxu0 0.0
    %267 = vmatpush1.msra.mxu0 0.0
    %268 = vmatprep.subr.mxu0 0.0
    %269 = vmatpush1.msra.mxu0 0.0
    %270 = vmatprep.subr.mxu0 0.0
    %271 = vmatpush1.msra.mxu0 0.0
    %272 = vmatprep.subr.mxu0 0.0
    %273 = vmatpush1.msra.mxu0 0.0
    %274 = vmatprep.subr.mxu0 0.0
    %275 = vmatpush1.msra.mxu0 0.0
    %276 = vmatprep.subr.mxu0 0.0
    %277 = vmatpush1.msra.mxu0 0.0
    %278 = vmatprep.subr.mxu0 0.0
    %279 = vmatpush1.msra.mxu0 0.0
    %280 = vmatprep.subr.mxu0 0.0
    %281 = vmatpush1.msra.mxu0 0.0
    %282 = vmatprep.subr.mxu0 0.0
    %283 = vmatpush1.msra.mxu0 0.0
    %284 = vmatprep.subr.mxu0 0.0
    %285 = vmatpush1.msra.mxu0 0.0
    %286 = vmatprep.subr.mxu0 0.0
    %287 = vmatpush1.msra.mxu0 0.0
    %288 = vmatprep.subr.mxu0 0.0
    %289 = vmatpush1.msra.mxu0 0.0
    %290 = vmatprep.subr.mxu0 0.0
    %291 = vmatpush1.msra.mxu0 0.0
    %292 = vmatprep.subr.mxu0 0.0
    %293 = vmatpush1.msra.mxu0 0.0
    %294 = vmatprep.subr.mxu0 0.0
    %295 = vmatpush1.msra.mxu0 0.0
    %296 = vmatprep.subr.mxu0 0.0
    %297 = vmatpush1.msra.mxu0 0.0
    %298 = vmatprep.subr.mxu0 0.0
    %299 = vmatpush1.msra.mxu0 0.0
    %300 = vmatprep.subr.mxu0 0.0
    %301 = vmatpush1.msra.mxu0 0.0
    %302 = vmatprep.mubr.f32.mxu0 0.0
    %303 = vmatmul.mubr.f32.gmra.mrb[0].mxu0 %v89
    %v304 = vpop.f32.mrb[0].mxu0
    %v305 = vadd.f32 %v78, %v304
    %v306 = vpop.f32.mrb[0].mxu0
    %v307 = vadd.f32 %v82, %v306
    %308 = vmatprep.mubr.f32.mxu0 0.0
    %309 = vmatmul.mubr.f32.gmra.mrb[0].mxu0 %v92
    %v310 = vpop.f32.mrb[0].mxu0
    %v311 = vadd.f32 %v78, %v310
    %v312 = vpop.f32.mrb[0].mxu0
    %v313 = vadd.f32 %v82, %v312
    %314 = vmatprep.mubr.f32.mxu0 0.0
    %315 = vmatmul.mubr.f32.gmra.mrb[0].mxu0 %v95
    %v316 = vpop.f32.mrb[0].mxu0
    %v317 = vadd.f32 %v78, %v316
    %v318 = vpop.f32.mrb[0].mxu0
    %v319 = vadd.f32 %v82, %v318
    %320 = vmatprep.mubr.f32.mxu0 0.0
    %321 = vmatmul.mubr.f32.gmra.mrb[0].mxu0 %v98
    %v322 = vpop.f32.mrb[0].mxu0
    %v323 = vadd.f32 %v78, %v322
    %v324 = vpop.f32.mrb[0].mxu0
    %v325 = vadd.f32 %v82, %v324
    %326 = vmatprep.mubr.f32.mxu0 0.0
    %327 = vmatmul.mubr.f32.gmra.mrb[0].mxu0 %v101
    %v328 = vpop.f32.mrb[0].mxu0
    %v329 = vadd.f32 %v78, %v328
    %v330 = vpop.f32.mrb[0].mxu0
    %v331 = vadd.f32 %v82, %v330
    %332 = vmatprep.mubr.f32.mxu0 0.0
    %333 = vmatmul.mubr.f32.gmra.mrb[0].mxu0 %v104
    %v334 = vpop.f32.mrb[0].mxu0
    %v335 = vadd.f32 %v78, %v334
    %v336 = vpop.f32.mrb[0].mxu0
    %v337 = vadd.f32 %v82, %v336
    %338 = vmatprep.mubr.f32.mxu0 0.0
    %339 = vmatmul.mubr.f32.gmra.mrb[0].mxu0 %v107
    %v340 = vpop.f32.mrb[0].mxu0
    %v341 = vadd.f32 %v78, %v340
    %v342 = vpop.f32.mrb[0].mxu0
    %v343 = vadd.f32 %v82, %v342
    %344 = vmatprep.mubr.f32.mxu0 0.0
    %345 = vmatmul.mubr.f32.gmra.mrb[0].mxu0 %v110
    %v346 = vpop.f32.mrb[0].mxu0
    %v347 = vadd.f32 %v78, %v346
    %v348 = vpop.f32.mrb[0].mxu0
    %v349 = vadd.f32 %v82, %v348
    %350 = vdwg.mxu0
    %351 = vst [vmem:[#allocation4] sm:$0xff] %v192
    %352 = vst [vmem:[#allocation4 + $0x8] sm:$0xff] %v194
    %353 = vst [vmem:[#allocation4 + $0x10] sm:$0xff] %v305
    %354 = vst [vmem:[#allocation4 + $0x18] sm:$0xff] %v307
    %355 = vst [vmem:[#allocation4 + $0x20] sm:$0xff] %v198
    %356 = vst [vmem:[#allocation4 + $0x28] sm:$0xff] %v200
    %357 = vst [vmem:[#allocation4 + $0x30] sm:$0xff] %v311
    %358 = vst [vmem:[#allocation4 + $0x38] sm:$0xff] %v313
    %359 = vst [vmem:[#allocation4 + $0x40] sm:$0xff] %v204
    %360 = vst [vmem:[#allocation4 + $0x48] sm:$0xff] %v206
    %361 = vst [vmem:[#allocation4 + $0x50] sm:$0xff] %v317
    %362 = vst [vmem:[#allocation4 + $0x58] sm:$0xff] %v319
    %363 = vst [vmem:[#allocation4 + $0x60] sm:$0xff] %v210
    %364 = vst [vmem:[#allocation4 + $0x68] sm:$0xff] %v212
    %365 = vst [vmem:[#allocation4 + $0x70] sm:$0xff] %v323
    %366 = vst [vmem:[#allocation4 + $0x78] sm:$0xff] %v325
    %367 = vst [vmem:[#allocation4 + $0x80] sm:$0xff] %v216
    %368 = vst [vmem:[#allocation4 + $0x88] sm:$0xff] %v218
    %369 = vst [vmem:[#allocation4 + $0x90] sm:$0xff] %v329
    %370 = vst [vmem:[#allocation4 + $0x98] sm:$0xff] %v331
    %371 = vst [vmem:[#allocation4 + $0xa0] sm:$0xff] %v222
    %372 = vst [vmem:[#allocation4 + $0xa8] sm:$0xff] %v224
    %373 = vst [vmem:[#allocation4 + $0xb0] sm:$0xff] %v335
    %374 = vst [vmem:[#allocation4 + $0xb8] sm:$0xff] %v337
    %375 = vst [vmem:[#allocation4 + $0xc0] sm:$0xff] %v228
    %376 = vst [vmem:[#allocation4 + $0xc8] sm:$0xff] %v230
    %377 = vst [vmem:[#allocation4 + $0xd0] sm:$0xff] %v341
    %378 = vst [vmem:[#allocation4 + $0xd8] sm:$0xff] %v343
    %379 = vst [vmem:[#allocation4 + $0xe0] sm:$0xff] %v234
    %380 = vst [vmem:[#allocation4 + $0xe8] sm:$0xff] %v236
    %381 = vst [vmem:[#allocation4 + $0xf0] sm:$0xff] %v347
    %382 = vst [vmem:[#allocation4 + $0xf8] sm:$0xff] %v349
    %v383 = vld [vmem:[#allocation2] sm:$0xff]
    %v384 = vld [vmem:[#allocation3] sm:$0xff]
    %s385 = smul.u32 0, 4
    %s386 = smul.addr %s385, 8
    %s387 = scalar_lea.vmem [#allocation4], %s386
    %v388 = vld [vmem:[%s387] sm:$0xff]
    %v389 = vld [vmem:[%s387 + $0x8] sm:$0xff]
    %v390 = vld [vmem:[%s387 + $0x10] sm:$0xff]
    %v391 = vld [vmem:[%s387 + $0x18] sm:$0xff]
    %v392 = vld [vmem:[#allocation5] sm:$0xff]
    %v393 = vld [vmem:[#allocation5 + $0x8] sm:$0xff]
    %v394 = vld [vmem:[#allocation5 + $0x10] sm:$0xff]
    %v395 = vld [vmem:[#allocation5 + $0x18] sm:$0xff]
    %v396 = vld [vmem:[#allocation5 + $0x20] sm:$0xff]
    %v397 = vld [vmem:[#allocation5 + $0x28] sm:$0xff]
    %v398 = vld [vmem:[#allocation5 + $0x30] sm:$0xff]
    %v399 = vld [vmem:[#allocation5 + $0x38] sm:$0xff]
    %v400 = vld [vmem:[#allocation5 + $0x40] sm:$0xff]
    %v401 = vld [vmem:[#allocation5 + $0x48] sm:$0xff]
    %v402 = vld [vmem:[#allocation5 + $0x50] sm:$0xff]
    %v403 = vld [vmem:[#allocation5 + $0x58] sm:$0xff]
    %v404 = vld [vmem:[#allocation5 + $0x60] sm:$0xff]
    %v405 = vld [vmem:[#allocation5 + $0x68] sm:$0xff]
    %v406 = vld [vmem:[#allocation5 + $0x70] sm:$0xff]
    %v407 = vld [vmem:[#allocation5 + $0x78] sm:$0xff]
    %v408 = vld [vmem:[#allocation5 + $0x80] sm:$0xff]
    %v409 = vld [vmem:[#allocation5 + $0x88] sm:$0xff]
    %v410 = vld [vmem:[#allocation5 + $0x90] sm:$0xff]
    %v411 = vld [vmem:[#allocation5 + $0x98] sm:$0xff]
    %v412 = vld [vmem:[#allocation5 + $0xa0] sm:$0xff]
    %v413 = vld [vmem:[#allocation5 + $0xa8] sm:$0xff]
    %v414 = vld [vmem:[#allocation5 + $0xb0] sm:$0xff]
    %v415 = vld [vmem:[#allocation5 + $0xb8] sm:$0xff]
    %v416 = vld [vmem:[#allocation5 + $0xc0] sm:$0xff]
    %v417 = vld [vmem:[#allocation5 + $0xc8] sm:$0xff]
    %v418 = vld [vmem:[#allocation5 + $0xd0] sm:$0xff]
    %v419 = vld [vmem:[#allocation5 + $0xd8] sm:$0xff]
    %v420 = vld [vmem:[#allocation5 + $0xe0] sm:$0xff]
    %v421 = vld [vmem:[#allocation5 + $0xe8] sm:$0xff]
    %v422 = vld [vmem:[#allocation5 + $0xf0] sm:$0xff]
    %v423 = vld [vmem:[#allocation5 + $0xf8] sm:$0xff]
    %v424 = vld [vmem:[#allocation5 + $0x100] sm:$0xff]
    %v425 = vld [vmem:[#allocation5 + $0x108] sm:$0xff]
    %v426 = vld [vmem:[#allocation5 + $0x110] sm:$0xff]
    %v427 = vld [vmem:[#allocation5 + $0x118] sm:$0xff]
    %v428 = vld [vmem:[#allocation5 + $0x120] sm:$0xff]
    %v429 = vld [vmem:[#allocation5 + $0x128] sm:$0xff]
    %v430 = vld [vmem:[#allocation5 + $0x130] sm:$0xff]
    %v431 = vld [vmem:[#allocation5 + $0x138] sm:$0xff]
    %v432 = vld [vmem:[#allocation5 + $0x140] sm:$0xff]
    %v433 = vld [vmem:[#allocation5 + $0x148] sm:$0xff]
    %v434 = vld [vmem:[#allocation5 + $0x150] sm:$0xff]
    %v435 = vld [vmem:[#allocation5 + $0x158] sm:$0xff]
    %v436 = vld [vmem:[#allocation5 + $0x160] sm:$0xff]
    %v437 = vld [vmem:[#allocation5 + $0x168] sm:$0xff]
    %v438 = vld [vmem:[#allocation5 + $0x170] sm:$0xff]
    %v439 = vld [vmem:[#allocation5 + $0x178] sm:$0xff]
    %v440 = vld [vmem:[#allocation5 + $0x180] sm:$0xff]
    %v441 = vld [vmem:[#allocation5 + $0x188] sm:$0xff]
    %v442 = vld [vmem:[#allocation5 + $0x190] sm:$0xff]
    %v443 = vld [vmem:[#allocation5 + $0x198] sm:$0xff]
    %v444 = vld [vmem:[#allocation5 + $0x1a0] sm:$0xff]
    %v445 = vld [vmem:[#allocation5 + $0x1a8] sm:$0xff]
    %v446 = vld [vmem:[#allocation5 + $0x1b0] sm:$0xff]
    %v447 = vld [vmem:[#allocation5 + $0x1b8] sm:$0xff]
    %v448 = vld [vmem:[#allocation5 + $0x1c0] sm:$0xff]
    %v449 = vld [vmem:[#allocation5 + $0x1c8] sm:$0xff]
    %v450 = vld [vmem:[#allocation5 + $0x1d0] sm:$0xff]
    %v451 = vld [vmem:[#allocation5 + $0x1d8] sm:$0xff]
    %v452 = vld [vmem:[#allocation5 + $0x1e0] sm:$0xff]
    %v453 = vld [vmem:[#allocation5 + $0x1e8] sm:$0xff]
    %v454 = vld [vmem:[#allocation5 + $0x1f0] sm:$0xff]
    %v455 = vld [vmem:[#allocation5 + $0x1f8] sm:$0xff]
    %456 = vmatprep.subr.mxu0 %v393
    %457 = vmatpush1.msra.mxu0 %v392
    %458 = vmatprep.subr.mxu0 %v397
    %459 = vmatpush1.msra.mxu0 %v396
    %460 = vmatprep.subr.mxu0 %v401
    %461 = vmatpush1.msra.mxu0 %v400
    %462 = vmatprep.subr.mxu0 %v405
    %463 = vmatpush1.msra.mxu0 %v404
    %464 = vmatprep.subr.mxu0 %v409
    %465 = vmatpush1.msra.mxu0 %v408
    %466 = vmatprep.subr.mxu0 %v413
    %467 = vmatpush1.msra.mxu0 %v412
    %468 = vmatprep.subr.mxu0 %v417
    %469 = vmatpush1.msra.mxu0 %v416
    %470 = vmatprep.subr.mxu0 %v421
    %471 = vmatpush1.msra.mxu0 %v420
    %472 = vmatprep.subr.mxu0 %v425
    %473 = vmatpush1.msra.mxu0 %v424
    %474 = vmatprep.subr.mxu0 %v429
    %475 = vmatpush1.msra.mxu0 %v428
    %476 = vmatprep.subr.mxu0 %v433
    %477 = vmatpush1.msra.mxu0 %v432
    %478 = vmatprep.subr.mxu0 %v437
    %479 = vmatpush1.msra.mxu0 %v436
    %480 = vmatprep.subr.mxu0 %v441
    %481 = vmatpush1.msra.mxu0 %v440
    %482 = vmatprep.subr.mxu0 %v445
    %483 = vmatpush1.msra.mxu0 %v444
    %484 = vmatprep.subr.mxu0 %v449
    %485 = vmatpush1.msra.mxu0 %v448
    %486 = vmatprep.subr.mxu0 %v453
    %487 = vmatpush1.msra.mxu0 %v452
    %488 = vmatprep.subr.mxu0 0.0
    %489 = vmatpush1.msra.mxu0 0.0
    %490 = vmatprep.subr.mxu0 0.0
    %491 = vmatpush1.msra.mxu0 0.0
    %492 = vmatprep.subr.mxu0 0.0
    %493 = vmatpush1.msra.mxu0 0.0
    %494 = vmatprep.subr.mxu0 0.0
    %495 = vmatpush1.msra.mxu0 0.0
    %496 = vmatprep.subr.mxu0 0.0
    %497 = vmatpush1.msra.mxu0 0.0
    %498 = vmatprep.subr.mxu0 0.0
    %499 = vmatpush1.msra.mxu0 0.0
    %500 = vmatprep.subr.mxu0 0.0
    %501 = vmatpush1.msra.mxu0 0.0
    %502 = vmatprep.subr.mxu0 0.0
    %503 = vmatpush1.msra.mxu0 0.0
    %504 = vmatprep.subr.mxu0 0.0
    %505 = vmatpush1.msra.mxu0 0.0
    %506 = vmatprep.subr.mxu0 0.0
    %507 = vmatpush1.msra.mxu0 0.0
    %508 = vmatprep.subr.mxu0 0.0
    %509 = vmatpush1.msra.mxu0 0.0
    %510 = vmatprep.subr.mxu0 0.0
    %511 = vmatpush1.msra.mxu0 0.0
    %512 = vmatprep.subr.mxu0 0.0
    %513 = vmatpush1.msra.mxu0 0.0
    %514 = vmatprep.subr.mxu0 0.0
    %515 = vmatpush1.msra.mxu0 0.0
    %516 = vmatprep.subr.mxu0 0.0
    %517 = vmatpush1.msra.mxu0 0.0
    %518 = vmatprep.subr.mxu0 0.0
    %519 = vmatpush1.msra.mxu0 0.0
    %520 = vmatprep.mubr.f32.mxu0 0.0
    %521 = vmatmul.mubr.f32.gmra.mrb[0].mxu0 %v383
    %v522 = vpop.f32.mrb[0].mxu0
    %v523 = vadd.f32 0.0, %v522
    %v524 = vpop.f32.mrb[0].mxu0
    %v525 = vadd.f32 0.0, %v524
    %526 = vdwg.mxu0
    %527 = vmatprep.subr.mxu0 %v395
    %528 = vmatpush1.msra.mxu0 %v394
    %529 = vmatprep.subr.mxu0 %v399
    %530 = vmatpush1.msra.mxu0 %v398
    %531 = vmatprep.subr.mxu0 %v403
    %532 = vmatpush1.msra.mxu0 %v402
    %533 = vmatprep.subr.mxu0 %v407
    %534 = vmatpush1.msra.mxu0 %v406
    %535 = vmatprep.subr.mxu0 %v411
    %536 = vmatpush1.msra.mxu0 %v410
    %537 = vmatprep.subr.mxu0 %v415
    %538 = vmatpush1.msra.mxu0 %v414
    %539 = vmatprep.subr.mxu0 %v419
    %540 = vmatpush1.msra.mxu0 %v418
    %541 = vmatprep.subr.mxu0 %v423
    %542 = vmatpush1.msra.mxu0 %v422
    %543 = vmatprep.subr.mxu0 %v427
    %544 = vmatpush1.msra.mxu0 %v426
    %545 = vmatprep.subr.mxu0 %v431
    %546 = vmatpush1.msra.mxu0 %v430
    %547 = vmatprep.subr.mxu0 %v435
    %548 = vmatpush1.msra.mxu0 %v434
    %549 = vmatprep.subr.mxu0 %v439
    %550 = vmatpush1.msra.mxu0 %v438
    %551 = vmatprep.subr.mxu0 %v443
    %552 = vmatpush1.msra.mxu0 %v442
    %553 = vmatprep.subr.mxu0 %v447
    %554 = vmatpush1.msra.mxu0 %v446
    %555 = vmatprep.subr.mxu0 %v451
    %556 = vmatpush1.msra.mxu0 %v450
    %557 = vmatprep.subr.mxu0 %v455
    %558 = vmatpush1.msra.mxu0 %v454
    %559 = vmatprep.subr.mxu0 0.0
    %560 = vmatpush1.msra.mxu0 0.0
    %561 = vmatprep.subr.mxu0 0.0
    %562 = vmatpush1.msra.mxu0 0.0
    %563 = vmatprep.subr.mxu0 0.0
    %564 = vmatpush1.msra.mxu0 0.0
    %565 = vmatprep.subr.mxu0 0.0
    %566 = vmatpush1.msra.mxu0 0.0
    %567 = vmatprep.subr.mxu0 0.0
    %568 = vmatpush1.msra.mxu0 0.0
    %569 = vmatprep.subr.mxu0 0.0
    %570 = vmatpush1.msra.mxu0 0.0
    %571 = vmatprep.subr.mxu0 0.0
    %572 = vmatpush1.msra.mxu0 0.0
    %573 = vmatprep.subr.mxu0 0.0
    %574 = vmatpush1.msra.mxu0 0.0
    %575 = vmatprep.subr.mxu0 0.0
    %576 = vmatpush1.msra.mxu0 0.0
    %577 = vmatprep.subr.mxu0 0.0
    %578 = vmatpush1.msra.mxu0 0.0
    %579 = vmatprep.subr.mxu0 0.0
    %580 = vmatpush1.msra.mxu0 0.0
    %581 = vmatprep.subr.mxu0 0.0
    %582 = vmatpush1.msra.mxu0 0.0
    %583 = vmatprep.subr.mxu0 0.0
    %584 = vmatpush1.msra.mxu0 0.0
    %585 = vmatprep.subr.mxu0 0.0
    %586 = vmatpush1.msra.mxu0 0.0
    %587 = vmatprep.subr.mxu0 0.0
    %588 = vmatpush1.msra.mxu0 0.0
    %589 = vmatprep.subr.mxu0 0.0
    %590 = vmatpush1.msra.mxu0 0.0
    %591 = vmatprep.mubr.f32.mxu0 0.0
    %592 = vmatmul.mubr.f32.gmra.mrb[0].mxu0 %v383
    %v593 = vpop.f32.mrb[0].mxu0
    %v594 = vadd.f32 0.0, %v593
    %v595 = vpop.f32.mrb[0].mxu0
    %v596 = vadd.f32 0.0, %v595
    %597 = vdwg.mxu0
    %v598 = vadd.f32 %v388, %v523
    %v599 = vadd.f32 %v389, %v525
    %v600 = vadd.f32 %v390, %v594
    %v601 = vadd.f32 %v391, %v596
    %v602 = vxor.u32 %v598, 2147483648
    %v603 = vxor.u32 %v599, 2147483648
    %v604 = vxor.u32 %v600, 2147483648
    %v605 = vmul.f32 %v602, 1.442695
    %v606 = vpow.pop %v605
    %v607 = vmul.f32 %v603, 1.442695
    %v608 = vpow.pop %v607
    %v609 = vmul.f32 %v604, 1.442695
    %v610 = vpow.pop %v609
    %v611 = vadd.f32 %v606, 1.0
    %v612 = vadd.f32 %v608, 1.0
    %v613 = vadd.f32 %v610, 1.0
    %v614 = vrcp.pop %v611
    %v615 = vmul.f32 1.0, %v614
    %v616 = vrcp.pop %v612
    %v617 = vmul.f32 1.0, %v616
    %v618 = vrcp.pop %v613
    %v619 = vmul.f32 1.0, %v618
    %v620 = vtanh.pop %v601
    %v621 = vmul.f32 %v617, %v384
    %v622 = vmul.f32 %v615, %v620
    %v623 = vadd.f32 %v621, %v622
    %v624 = vtanh.pop %v623
    %v625 = vmul.f32 %v619, %v624
    %s626 = smul.u32 1, 4
    %s627 = smul.addr %s626, 8
    %s628 = scalar_lea.vmem [#allocation4], %s627
    %v629 = vld [vmem:[%s628] sm:$0xff]
    %v630 = vld [vmem:[%s628 + $0x8] sm:$0xff]
    %v631 = vld [vmem:[%s628 + $0x10] sm:$0xff]
    %v632 = vld [vmem:[%s628 + $0x18] sm:$0xff]
    %633 = vmatprep.subr.mxu0 %v393
    %634 = vmatpush1.msra.mxu0 %v392
    %635 = vmatprep.subr.mxu0 %v397
    %636 = vmatpush1.msra.mxu0 %v396
    %637 = vmatprep.subr.mxu0 %v401
    %638 = vmatpush1.msra.mxu0 %v400
    %639 = vmatprep.subr.mxu0 %v405
    %640 = vmatpush1.msra.mxu0 %v404
    %641 = vmatprep.subr.mxu0 %v409
    %642 = vmatpush1.msra.mxu0 %v408
    %643 = vmatprep.subr.mxu0 %v413
    %644 = vmatpush1.msra.mxu0 %v412
    %645 = vmatprep.subr.mxu0 %v417
    %646 = vmatpush1.msra.mxu0 %v416
    %647 = vmatprep.subr.mxu0 %v421
    %648 = vmatpush1.msra.mxu0 %v420
    %649 = vmatprep.subr.mxu0 %v425
    %650 = vmatpush1.msra.mxu0 %v424
    %651 = vmatprep.subr.mxu0 %v429
    %652 = vmatpush1.msra.mxu0 %v428
    %653 = vmatprep.subr.mxu0 %v433
    %654 = vmatpush1.msra.mxu0 %v432
    %655 = vmatprep.subr.mxu0 %v437
    %656 = vmatpush1.msra.mxu0 %v436
    %657 = vmatprep.subr.mxu0 %v441
    %658 = vmatpush1.msra.mxu0 %v440
    %659 = vmatprep.subr.mxu0 %v445
    %660 = vmatpush1.msra.mxu0 %v444
    %661 = vmatprep.subr.mxu0 %v449
    %662 = vmatpush1.msra.mxu0 %v448
    %663 = vmatprep.subr.mxu0 %v453
    %664 = vmatpush1.msra.mxu0 %v452
    %665 = vmatprep.subr.mxu0 0.0
    %666 = vmatpush1.msra.mxu0 0.0
    %667 = vmatprep.subr.mxu0 0.0
    %668 = vmatpush1.msra.mxu0 0.0
    %669 = vmatprep.subr.mxu0 0.0
    %670 = vmatpush1.msra.mxu0 0.0
    %671 = vmatprep.subr.mxu0 0.0
    %672 = vmatpush1.msra.mxu0 0.0
    %673 = vmatprep.subr.mxu0 0.0
    %674 = vmatpush1.msra.mxu0 0.0
    %675 = vmatprep.subr.mxu0 0.0
    %676 = vmatpush1.msra.mxu0 0.0
    %677 = vmatprep.subr.mxu0 0.0
    %678 = vmatpush1.msra.mxu0 0.0
    %679 = vmatprep.subr.mxu0 0.0
    %680 = vmatpush1.msra.mxu0 0.0
    %681 = vmatprep.subr.mxu0 0.0
    %682 = vmatpush1.msra.mxu0 0.0
    %683 = vmatprep.subr.mxu0 0.0
    %684 = vmatpush1.msra.mxu0 0.0
    %685 = vmatprep.subr.mxu0 0.0
    %686 = vmatpush1.msra.mxu0 0.0
    %687 = vmatprep.subr.mxu0 0.0
    %688 = vmatpush1.msra.mxu0 0.0
    %689 = vmatprep.subr.mxu0 0.0
    %690 = vmatpush1.msra.mxu0 0.0
    %691 = vmatprep.subr.mxu0 0.0
    %692 = vmatpush1.msra.mxu0 0.0
    %693 = vmatprep.subr.mxu0 0.0
    %694 = vmatpush1.msra.mxu0 0.0
    %695 = vmatprep.subr.mxu0 0.0
    %696 = vmatpush1.msra.mxu0 0.0
    %697 = vmatprep.mubr.f32.mxu0 0.0
    %698 = vmatmul.mubr.f32.gmra.mrb[0].mxu0 %v625
    %v699 = vpop.f32.mrb[0].mxu0
    %v700 = vadd.f32 0.0, %v699
    %v701 = vpop.f32.mrb[0].mxu0
    %v702 = vadd.f32 0.0, %v701
    %703 = vdwg.mxu0
    %704 = vmatprep.subr.mxu0 %v395
    %705 = vmatpush1.msra.mxu0 %v394
    %706 = vmatprep.subr.mxu0 %v399
    %707 = vmatpush1.msra.mxu0 %v398
    %708 = vmatprep.subr.mxu0 %v403
    %709 = vmatpush1.msra.mxu0 %v402
    %710 = vmatprep.subr.mxu0 %v407
    %711 = vmatpush1.msra.mxu0 %v406
    %712 = vmatprep.subr.mxu0 %v411
    %713 = vmatpush1.msra.mxu0 %v410
    %714 = vmatprep.subr.mxu0 %v415
    %715 = vmatpush1.msra.mxu0 %v414
    %716 = vmatprep.subr.mxu0 %v419
    %717 = vmatpush1.msra.mxu0 %v418
    %718 = vmatprep.subr.mxu0 %v423
    %719 = vmatpush1.msra.mxu0 %v422
    %720 = vmatprep.subr.mxu0 %v427
    %721 = vmatpush1.msra.mxu0 %v426
    %722 = vmatprep.subr.mxu0 %v431
    %723 = vmatpush1.msra.mxu0 %v430
    %724 = vmatprep.subr.mxu0 %v435
    %725 = vmatpush1.msra.mxu0 %v434
    %726 = vmatprep.subr.mxu0 %v439
    %727 = vmatpush1.msra.mxu0 %v438
    %728 = vmatprep.subr.mxu0 %v443
    %729 = vmatpush1.msra.mxu0 %v442
    %730 = vmatprep.subr.mxu0 %v447
    %731 = vmatpush1.msra.mxu0 %v446
    %732 = vmatprep.subr.mxu0 %v451
    %733 = vmatpush1.msra.mxu0 %v450
    %734 = vmatprep.subr.mxu0 %v455
    %735 = vmatpush1.msra.mxu0 %v454
    %736 = vmatprep.subr.mxu0 0.0
    %737 = vmatpush1.msra.mxu0 0.0
    %738 = vmatprep.subr.mxu0 0.0
    %739 = vmatpush1.msra.mxu0 0.0
    %740 = vmatprep.subr.mxu0 0.0
    %741 = vmatpush1.msra.mxu0 0.0
    %742 = vmatprep.subr.mxu0 0.0
    %743 = vmatpush1.msra.mxu0 0.0
    %744 = vmatprep.subr.mxu0 0.0
    %745 = vmatpush1.msra.mxu0 0.0
    %746 = vmatprep.subr.mxu0 0.0
    %747 = vmatpush1.msra.mxu0 0.0
    %748 = vmatprep.subr.mxu0 0.0
    %749 = vmatpush1.msra.mxu0 0.0
    %750 = vmatprep.subr.mxu0 0.0
    %751 = vmatpush1.msra.mxu0 0.0
    %752 = vmatprep.subr.mxu0 0.0
    %753 = vmatpush1.msra.mxu0 0.0
    %754 = vmatprep.subr.mxu0 0.0
    %755 = vmatpush1.msra.mxu0 0.0
    %756 = vmatprep.subr.mxu0 0.0
    %757 = vmatpush1.msra.mxu0 0.0
    %758 = vmatprep.subr.mxu0 0.0
    %759 = vmatpush1.msra.mxu0 0.0
    %760 = vmatprep.subr.mxu0 0.0
    %761 = vmatpush1.msra.mxu0 0.0
    %762 = vmatprep.subr.mxu0 0.0
    %763 = vmatpush1.msra.mxu0 0.0
    %764 = vmatprep.subr.mxu0 0.0
    %765 = vmatpush1.msra.mxu0 0.0
    %766 = vmatprep.subr.mxu0 0.0
    %767 = vmatpush1.msra.mxu0 0.0
    %768 = vmatprep.mubr.f32.mxu0 0.0
    %769 = vmatmul.mubr.f32.gmra.mrb[0].mxu0 %v625
    %v770 = vpop.f32.mrb[0].mxu0
    %v771 = vadd.f32 0.0, %v770
    %v772 = vpop.f32.mrb[0].mxu0
    %v773 = vadd.f32 0.0, %v772
    %774 = vdwg.mxu0
    %v775 = vadd.f32 %v629, %v700
    %v776 = vadd.f32 %v630, %v702
    %v777 = vadd.f32 %v631, %v771
    %v778 = vadd.f32 %v632, %v773
    %v779 = vxor.u32 %v775, 2147483648
    %v780 = vxor.u32 %v776, 2147483648
    %v781 = vxor.u32 %v777, 2147483648
    %v782 = vmul.f32 %v779, 1.442695
    %v783 = vpow.pop %v782
    %v784 = vmul.f32 %v780, 1.442695
    %v785 = vpow.pop %v784
    %v786 = vmul.f32 %v781, 1.442695
    %v787 = vpow.pop %v786
    %v788 = vadd.f32 %v783, 1.0
    %v789 = vadd.f32 %v785, 1.0
    %v790 = vadd.f32 %v787, 1.0
    %v791 = vrcp.pop %v788
    %v792 = vmul.f32 1.0, %v791
    %v793 = vrcp.pop %v789
    %v794 = vmul.f32 1.0, %v793
    %v795 = vrcp.pop %v790
    %v796 = vmul.f32 1.0, %v795
    %v797 = vtanh.pop %v778
    %v798 = vmul.f32 %v794, %v623
    %v799 = vmul.f32 %v792, %v797
    %v800 = vadd.f32 %v798, %v799
    %v801 = vtanh.pop %v800
    %v802 = vmul.f32 %v796, %v801
    %s803 = smul.u32 2, 4
    %s804 = smul.addr %s803, 8
    %s805 = scalar_lea.vmem [#allocation4], %s804
    %v806 = vld [vmem:[%s805] sm:$0xff]
    %v807 = vld [vmem:[%s805 + $0x8] sm:$0xff]
    %v808 = vld [vmem:[%s805 + $0x10] sm:$0xff]
    %v809 = vld [vmem:[%s805 + $0x18] sm:$0xff]
    %810 = vmatprep.subr.mxu0 %v393
    %811 = vmatpush1.msra.mxu0 %v392
    %812 = vmatprep.subr.mxu0 %v397
    %813 = vmatpush1.msra.mxu0 %v396
    %814 = vmatprep.subr.mxu0 %v401
    %815 = vmatpush1.msra.mxu0 %v400
    %816 = vmatprep.subr.mxu0 %v405
    %817 = vmatpush1.msra.mxu0 %v404
    %818 = vmatprep.subr.mxu0 %v409
    %819 = vmatpush1.msra.mxu0 %v408
    %820 = vmatprep.subr.mxu0 %v413
    %821 = vmatpush1.msra.mxu0 %v412
    %822 = vmatprep.subr.mxu0 %v417
    %823 = vmatpush1.msra.mxu0 %v416
    %824 = vmatprep.subr.mxu0 %v421
    %825 = vmatpush1.msra.mxu0 %v420
    %826 = vmatprep.subr.mxu0 %v425
    %827 = vmatpush1.msra.mxu0 %v424
    %828 = vmatprep.subr.mxu0 %v429
    %829 = vmatpush1.msra.mxu0 %v428
    %830 = vmatprep.subr.mxu0 %v433
    %831 = vmatpush1.msra.mxu0 %v432
    %832 = vmatprep.subr.mxu0 %v437
    %833 = vmatpush1.msra.mxu0 %v436
    %834 = vmatprep.subr.mxu0 %v441
    %835 = vmatpush1.msra.mxu0 %v440
    %836 = vmatprep.subr.mxu0 %v445
    %837 = vmatpush1.msra.mxu0 %v444
    %838 = vmatprep.subr.mxu0 %v449
    %839 = vmatpush1.msra.mxu0 %v448
    %840 = vmatprep.subr.mxu0 %v453
    %841 = vmatpush1.msra.mxu0 %v452
    %842 = vmatprep.subr.mxu0 0.0
    %843 = vmatpush1.msra.mxu0 0.0
    %844 = vmatprep.subr.mxu0 0.0
    %845 = vmatpush1.msra.mxu0 0.0
    %846 = vmatprep.subr.mxu0 0.0
    %847 = vmatpush1.msra.mxu0 0.0
    %848 = vmatprep.subr.mxu0 0.0
    %849 = vmatpush1.msra.mxu0 0.0
    %850 = vmatprep.subr.mxu0 0.0
    %851 = vmatpush1.msra.mxu0 0.0
    %852 = vmatprep.subr.mxu0 0.0
    %853 = vmatpush1.msra.mxu0 0.0
    %854 = vmatprep.subr.mxu0 0.0
    %855 = vmatpush1.msra.mxu0 0.0
    %856 = vmatprep.subr.mxu0 0.0
    %857 = vmatpush1.msra.mxu0 0.0
    %858 = vmatprep.subr.mxu0 0.0
    %859 = vmatpush1.msra.mxu0 0.0
    %860 = vmatprep.subr.mxu0 0.0
    %861 = vmatpush1.msra.mxu0 0.0
    %862 = vmatprep.subr.mxu0 0.0
    %863 = vmatpush1.msra.mxu0 0.0
    %864 = vmatprep.subr.mxu0 0.0
    %865 = vmatpush1.msra.mxu0 0.0
    %866 = vmatprep.subr.mxu0 0.0
    %867 = vmatpush1.msra.mxu0 0.0
    %868 = vmatprep.subr.mxu0 0.0
    %869 = vmatpush1.msra.mxu0 0.0
    %870 = vmatprep.subr.mxu0 0.0
    %871 = vmatpush1.msra.mxu0 0.0
    %872 = vmatprep.subr.mxu0 0.0
    %873 = vmatpush1.msra.mxu0 0.0
    %874 = vmatprep.mubr.f32.mxu0 0.0
    %875 = vmatmul.mubr.f32.gmra.mrb[0].mxu0 %v802
    %v876 = vpop.f32.mrb[0].mxu0
    %v877 = vadd.f32 0.0, %v876
    %v878 = vpop.f32.mrb[0].mxu0
    %v879 = vadd.f32 0.0, %v878
    %880 = vdwg.mxu0
    %881 = vmatprep.subr.mxu0 %v395
    %882 = vmatpush1.msra.mxu0 %v394
    %883 = vmatprep.subr.mxu0 %v399
    %884 = vmatpush1.msra.mxu0 %v398
    %885 = vmatprep.subr.mxu0 %v403
    %886 = vmatpush1.msra.mxu0 %v402
    %887 = vmatprep.subr.mxu0 %v407
    %888 = vmatpush1.msra.mxu0 %v406
    %889 = vmatprep.subr.mxu0 %v411
    %890 = vmatpush1.msra.mxu0 %v410
    %891 = vmatprep.subr.mxu0 %v415
    %892 = vmatpush1.msra.mxu0 %v414
    %893 = vmatprep.subr.mxu0 %v419
    %894 = vmatpush1.msra.mxu0 %v418
    %895 = vmatprep.subr.mxu0 %v423
    %896 = vmatpush1.msra.mxu0 %v422
    %897 = vmatprep.subr.mxu0 %v427
    %898 = vmatpush1.msra.mxu0 %v426
    %899 = vmatprep.subr.mxu0 %v431
    %900 = vmatpush1.msra.mxu0 %v430
    %901 = vmatprep.subr.mxu0 %v435
    %902 = vmatpush1.msra.mxu0 %v434
    %903 = vmatprep.subr.mxu0 %v439
    %904 = vmatpush1.msra.mxu0 %v438
    %905 = vmatprep.subr.mxu0 %v443
    %906 = vmatpush1.msra.mxu0 %v442
    %907 = vmatprep.subr.mxu0 %v447
    %908 = vmatpush1.msra.mxu0 %v446
    %909 = vmatprep.subr.mxu0 %v451
    %910 = vmatpush1.msra.mxu0 %v450
    %911 = vmatprep.subr.mxu0 %v455
    %912 = vmatpush1.msra.mxu0 %v454
    %913 = vmatprep.subr.mxu0 0.0
    %914 = vmatpush1.msra.mxu0 0.0
    %915 = vmatprep.subr.mxu0 0.0
    %916 = vmatpush1.msra.mxu0 0.0
    %917 = vmatprep.subr.mxu0 0.0
    %918 = vmatpush1.msra.mxu0 0.0
    %919 = vmatprep.subr.mxu0 0.0
    %920 = vmatpush1.msra.mxu0 0.0
    %921 = vmatprep.subr.mxu0 0.0
    %922 = vmatpush1.msra.mxu0 0.0
    %923 = vmatprep.subr.mxu0 0.0
    %924 = vmatpush1.msra.mxu0 0.0
    %925 = vmatprep.subr.mxu0 0.0
    %926 = vmatpush1.msra.mxu0 0.0
    %927 = vmatprep.subr.mxu0 0.0
    %928 = vmatpush1.msra.mxu0 0.0
    %929 = vmatprep.subr.mxu0 0.0
    %930 = vmatpush1.msra.mxu0 0.0
    %931 = vmatprep.subr.mxu0 0.0
    %932 = vmatpush1.msra.mxu0 0.0
    %933 = vmatprep.subr.mxu0 0.0
    %934 = vmatpush1.msra.mxu0 0.0
    %935 = vmatprep.subr.mxu0 0.0
    %936 = vmatpush1.msra.mxu0 0.0
    %937 = vmatprep.subr.mxu0 0.0
    %938 = vmatpush1.msra.mxu0 0.0
    %939 = vmatprep.subr.mxu0 0.0
    %940 = vmatpush1.msra.mxu0 0.0
    %941 = vmatprep.subr.mxu0 0.0
    %942 = vmatpush1.msra.mxu0 0.0
    %943 = vmatprep.subr.mxu0 0.0
    %944 = vmatpush1.msra.mxu0 0.0
    %945 = vmatprep.mubr.f32.mxu0 0.0
    %946 = vmatmul.mubr.f32.gmra.mrb[0].mxu0 %v802
    %v947 = vpop.f32.mrb[0].mxu0
    %v948 = vadd.f32 0.0, %v947
    %v949 = vpop.f32.mrb[0].mxu0
    %v950 = vadd.f32 0.0, %v949
    %951 = vdwg.mxu0
    %v952 = vadd.f32 %v806, %v877
    %v953 = vadd.f32 %v807, %v879
    %v954 = vadd.f32 %v808, %v948
    %v955 = vadd.f32 %v809, %v950
    %v956 = vxor.u32 %v952, 2147483648
    %v957 = vxor.u32 %v953, 2147483648
    %v958 = vxor.u32 %v954, 2147483648
    %v959 = vmul.f32 %v956, 1.442695
    %v960 = vpow.pop %v959
    %v961 = vmul.f32 %v957, 1.442695
    %v962 = vpow.pop %v961
    %v963 = vmul.f32 %v958, 1.442695
    %v964 = vpow.pop %v963
    %v965 = vadd.f32 %v960, 1.0
    %v966 = vadd.f32 %v962, 1.0
    %v967 = vadd.f32 %v964, 1.0
    %v968 = vrcp.pop %v965
    %v969 = vmul.f32 1.0, %v968
    %v970 = vrcp.pop %v966
    %v971 = vmul.f32 1.0, %v970
    %v972 = vrcp.pop %v967
    %v973 = vmul.f32 1.0, %v972
    %v974 = vtanh.pop %v955
    %v975 = vmul.f32 %v971, %v800
    %v976 = vmul.f32 %v969, %v974
    %v977 = vadd.f32 %v975, %v976
    %v978 = vtanh.pop %v977
    %v979 = vmul.f32 %v973, %v978
    %s980 = smul.u32 3, 4
    %s981 = smul.addr %s980, 8
    %s982 = scalar_lea.vmem [#allocation4], %s981
    %v983 = vld [vmem:[%s982] sm:$0xff]
    %v984 = vld [vmem:[%s982 + $0x8] sm:$0xff]
    %v985 = vld [vmem:[%s982 + $0x10] sm:$0xff]
    %v986 = vld [vmem:[%s982 + $0x18] sm:$0xff]
    %987 = vmatprep.subr.mxu0 %v393
    %988 = vmatpush1.msra.mxu0 %v392
    %989 = vmatprep.subr.mxu0 %v397
    %990 = vmatpush1.msra.mxu0 %v396
    %991 = vmatprep.subr.mxu0 %v401
    %992 = vmatpush1.msra.mxu0 %v400
    %993 = vmatprep.subr.mxu0 %v405
    %994 = vmatpush1.msra.mxu0 %v404
    %995 = vmatprep.subr.mxu0 %v409
    %996 = vmatpush1.msra.mxu0 %v408
    %997 = vmatprep.subr.mxu0 %v413
    %998 = vmatpush1.msra.mxu0 %v412
    %999 = vmatprep.subr.mxu0 %v417
    %1000 = vmatpush1.msra.mxu0 %v416
    %1001 = vmatprep.subr.mxu0 %v421
    %1002 = vmatpush1.msra.mxu0 %v420
    %1003 = vmatprep.subr.mxu0 %v425
    %1004 = vmatpush1.msra.mxu0 %v424
    %1005 = vmatprep.subr.mxu0 %v429
    %1006 = vmatpush1.msra.mxu0 %v428
    %1007 = vmatprep.subr.mxu0 %v433
    %1008 = vmatpush1.msra.mxu0 %v432
    %1009 = vmatprep.subr.mxu0 %v437
    %1010 = vmatpush1.msra.mxu0 %v436
    %1011 = vmatprep.subr.mxu0 %v441
    %1012 = vmatpush1.msra.mxu0 %v440
    %1013 = vmatprep.subr.mxu0 %v445
    %1014 = vmatpush1.msra.mxu0 %v444
    %1015 = vmatprep.subr.mxu0 %v449
    %1016 = vmatpush1.msra.mxu0 %v448
    %1017 = vmatprep.subr.mxu0 %v453
    %1018 = vmatpush1.msra.mxu0 %v452
    %1019 = vmatprep.subr.mxu0 0.0
    %1020 = vmatpush1.msra.mxu0 0.0
    %1021 = vmatprep.subr.mxu0 0.0
    %1022 = vmatpush1.msra.mxu0 0.0
    %1023 = vmatprep.subr.mxu0 0.0
    %1024 = vmatpush1.msra.mxu0 0.0
    %1025 = vmatprep.subr.mxu0 0.0
    %1026 = vmatpush1.msra.mxu0 0.0
    %1027 = vmatprep.subr.mxu0 0.0
    %1028 = vmatpush1.msra.mxu0 0.0
    %1029 = vmatprep.subr.mxu0 0.0
    %1030 = vmatpush1.msra.mxu0 0.0
    %1031 = vmatprep.subr.mxu0 0.0
    %1032 = vmatpush1.msra.mxu0 0.0
    %1033 = vmatprep.subr.mxu0 0.0
    %1034 = vmatpush1.msra.mxu0 0.0
    %1035 = vmatprep.subr.mxu0 0.0
    %1036 = vmatpush1.msra.mxu0 0.0
    %1037 = vmatprep.subr.mxu0 0.0
    %1038 = vmatpush1.msra.mxu0 0.0
    %1039 = vmatprep.subr.mxu0 0.0
    %1040 = vmatpush1.msra.mxu0 0.0
    %1041 = vmatprep.subr.mxu0 0.0
    %1042 = vmatpush1.msra.mxu0 0.0
    %1043 = vmatprep.subr.mxu0 0.0
    %1044 = vmatpush1.msra.mxu0 0.0
    %1045 = vmatprep.subr.mxu0 0.0
    %1046 = vmatpush1.msra.mxu0 0.0
    %1047 = vmatprep.subr.mxu0 0.0
    %1048 = vmatpush1.msra.mxu0 0.0
    %1049 = vmatprep.subr.mxu0 0.0
    %1050 = vmatpush1.msra.mxu0 0.0
    %1051 = vmatprep.mubr.f32.mxu0 0.0
    %1052 = vmatmul.mubr.f32.gmra.mrb[0].mxu0 %v979
    %v1053 = vpop.f32.mrb[0].mxu0
    %v1054 = vadd.f32 0.0, %v1053
    %v1055 = vpop.f32.mrb[0].mxu0
    %v1056 = vadd.f32 0.0, %v1055
    %1057 = vdwg.mxu0
    %1058 = vmatprep.subr.mxu0 %v395
    %1059 = vmatpush1.msra.mxu0 %v394
    %1060 = vmatprep.subr.mxu0 %v399
    %1061 = vmatpush1.msra.mxu0 %v398
    %1062 = vmatprep.subr.mxu0 %v403
    %1063 = vmatpush1.msra.mxu0 %v402
    %1064 = vmatprep.subr.mxu0 %v407
    %1065 = vmatpush1.msra.mxu0 %v406
    %1066 = vmatprep.subr.mxu0 %v411
    %1067 = vmatpush1.msra.mxu0 %v410
    %1068 = vmatprep.subr.mxu0 %v415
    %1069 = vmatpush1.msra.mxu0 %v414
    %1070 = vmatprep.subr.mxu0 %v419
    %1071 = vmatpush1.msra.mxu0 %v418
    %1072 = vmatprep.subr.mxu0 %v423
    %1073 = vmatpush1.msra.mxu0 %v422
    %1074 = vmatprep.subr.mxu0 %v427
    %1075 = vmatpush1.msra.mxu0 %v426
    %1076 = vmatprep.subr.mxu0 %v431
    %1077 = vmatpush1.msra.mxu0 %v430
    %1078 = vmatprep.subr.mxu0 %v435
    %1079 = vmatpush1.msra.mxu0 %v434
    %1080 = vmatprep.subr.mxu0 %v439
    %1081 = vmatpush1.msra.mxu0 %v438
    %1082 = vmatprep.subr.mxu0 %v443
    %1083 = vmatpush1.msra.mxu0 %v442
    %1084 = vmatprep.subr.mxu0 %v447
    %1085 = vmatpush1.msra.mxu0 %v446
    %1086 = vmatprep.subr.mxu0 %v451
    %1087 = vmatpush1.msra.mxu0 %v450
    %1088 = vmatprep.subr.mxu0 %v455
    %1089 = vmatpush1.msra.mxu0 %v454
    %1090 = vmatprep.subr.mxu0 0.0
    %1091 = vmatpush1.msra.mxu0 0.0
    %1092 = vmatprep.subr.mxu0 0.0
    %1093 = vmatpush1.msra.mxu0 0.0
    %1094 = vmatprep.subr.mxu0 0.0
    %1095 = vmatpush1.msra.mxu0 0.0
    %1096 = vmatprep.subr.mxu0 0.0
    %1097 = vmatpush1.msra.mxu0 0.0
    %1098 = vmatprep.subr.mxu0 0.0
    %1099 = vmatpush1.msra.mxu0 0.0
    %1100 = vmatprep.subr.mxu0 0.0
    %1101 = vmatpush1.msra.mxu0 0.0
    %1102 = vmatprep.subr.mxu0 0.0
    %1103 = vmatpush1.msra.mxu0 0.0
    %1104 = vmatprep.subr.mxu0 0.0
    %1105 = vmatpush1.msra.mxu0 0.0
    %1106 = vmatprep.subr.mxu0 0.0
    %1107 = vmatpush1.msra.mxu0 0.0
    %1108 = vmatprep.subr.mxu0 0.0
    %1109 = vmatpush1.msra.mxu0 0.0
    %1110 = vmatprep.subr.mxu0 0.0
    %1111 = vmatpush1.msra.mxu0 0.0
    %1112 = vmatprep.subr.mxu0 0.0
    %1113 = vmatpush1.msra.mxu0 0.0
    %1114 = vmatprep.subr.mxu0 0.0
    %1115 = vmatpush1.msra.mxu0 0.0
    %1116 = vmatprep.subr.mxu0 0.0
    %1117 = vmatpush1.msra.mxu0 0.0
    %1118 = vmatprep.subr.mxu0 0.0
    %1119 = vmatpush1.msra.mxu0 0.0
    %1120 = vmatprep.subr.mxu0 0.0
    %1121 = vmatpush1.msra.mxu0 0.0
    %1122 = vmatprep.mubr.f32.mxu0 0.0
    %1123 = vmatmul.mubr.f32.gmra.mrb[0].mxu0 %v979
    %v1124 = vpop.f32.mrb[0].mxu0
    %v1125 = vadd.f32 0.0, %v1124
    %v1126 = vpop.f32.mrb[0].mxu0
    %v1127 = vadd.f32 0.0, %v1126
    %1128 = vdwg.mxu0
    %v1129 = vadd.f32 %v983, %v1054
    %v1130 = vadd.f32 %v984, %v1056
    %v1131 = vadd.f32 %v985, %v1125
    %v1132 = vadd.f32 %v986, %v1127
    %v1133 = vxor.u32 %v1129, 2147483648
    %v1134 = vxor.u32 %v1130, 2147483648
    %v1135 = vxor.u32 %v1131, 2147483648
    %v1136 = vmul.f32 %v1133, 1.442695
    %v1137 = vpow.pop %v1136
    %v1138 = vmul.f32 %v1134, 1.442695
    %v1139 = vpow.pop %v1138
    %v1140 = vmul.f32 %v1135, 1.442695
    %v1141 = vpow.pop %v1140
    %v1142 = vadd.f32 %v1137, 1.0
    %v1143 = vadd.f32 %v1139, 1.0
    %v1144 = vadd.f32 %v1141, 1.0
    %v1145 = vrcp.pop %v1142
    %v1146 = vmul.f32 1.0, %v1145
    %v1147 = vrcp.pop %v1143
    %v1148 = vmul.f32 1.0, %v1147
    %v1149 = vrcp.pop %v1144
    %v1150 = vmul.f32 1.0, %v1149
    %v1151 = vtanh.pop %v1132
    %v1152 = vmul.f32 %v1148, %v977
    %v1153 = vmul.f32 %v1146, %v1151
    %v1154 = vadd.f32 %v1152, %v1153
    %v1155 = vtanh.pop %v1154
    %v1156 = vmul.f32 %v1150, %v1155
    %s1157 = smul.u32 4, 4
    %s1158 = smul.addr %s1157, 8
    %s1159 = scalar_lea.vmem [#allocation4], %s1158
    %v1160 = vld [vmem:[%s1159] sm:$0xff]
    %v1161 = vld [vmem:[%s1159 + $0x8] sm:$0xff]
    %v1162 = vld [vmem:[%s1159 + $0x10] sm:$0xff]
    %v1163 = vld [vmem:[%s1159 + $0x18] sm:$0xff]
    %1164 = vmatprep.subr.mxu0 %v393
    %1165 = vmatpush1.msra.mxu0 %v392
    %1166 = vmatprep.subr.mxu0 %v397
    %1167 = vmatpush1.msra.mxu0 %v396
    %1168 = vmatprep.subr.mxu0 %v401
    %1169 = vmatpush1.msra.mxu0 %v400
    %1170 = vmatprep.subr.mxu0 %v405
    %1171 = vmatpush1.msra.mxu0 %v404
    %1172 = vmatprep.subr.mxu0 %v409
    %1173 = vmatpush1.msra.mxu0 %v408
    %1174 = vmatprep.subr.mxu0 %v413
    %1175 = vmatpush1.msra.mxu0 %v412
    %1176 = vmatprep.subr.mxu0 %v417
    %1177 = vmatpush1.msra.mxu0 %v416
    %1178 = vmatprep.subr.mxu0 %v421
    %1179 = vmatpush1.msra.mxu0 %v420
    %1180 = vmatprep.subr.mxu0 %v425
    %1181 = vmatpush1.msra.mxu0 %v424
    %1182 = vmatprep.subr.mxu0 %v429
    %1183 = vmatpush1.msra.mxu0 %v428
    %1184 = vmatprep.subr.mxu0 %v433
    %1185 = vmatpush1.msra.mxu0 %v432
    %1186 = vmatprep.subr.mxu0 %v437
    %1187 = vmatpush1.msra.mxu0 %v436
    %1188 = vmatprep.subr.mxu0 %v441
    %1189 = vmatpush1.msra.mxu0 %v440
    %1190 = vmatprep.subr.mxu0 %v445
    %1191 = vmatpush1.msra.mxu0 %v444
    %1192 = vmatprep.subr.mxu0 %v449
    %1193 = vmatpush1.msra.mxu0 %v448
    %1194 = vmatprep.subr.mxu0 %v453
    %1195 = vmatpush1.msra.mxu0 %v452
    %1196 = vmatprep.subr.mxu0 0.0
    %1197 = vmatpush1.msra.mxu0 0.0
    %1198 = vmatprep.subr.mxu0 0.0
    %1199 = vmatpush1.msra.mxu0 0.0
    %1200 = vmatprep.subr.mxu0 0.0
    %1201 = vmatpush1.msra.mxu0 0.0
    %1202 = vmatprep.subr.mxu0 0.0
    %1203 = vmatpush1.msra.mxu0 0.0
    %1204 = vmatprep.subr.mxu0 0.0
    %1205 = vmatpush1.msra.mxu0 0.0
    %1206 = vmatprep.subr.mxu0 0.0
    %1207 = vmatpush1.msra.mxu0 0.0
    %1208 = vmatprep.subr.mxu0 0.0
    %1209 = vmatpush1.msra.mxu0 0.0
    %1210 = vmatprep.subr.mxu0 0.0
    %1211 = vmatpush1.msra.mxu0 0.0
    %1212 = vmatprep.subr.mxu0 0.0
    %1213 = vmatpush1.msra.mxu0 0.0
    %1214 = vmatprep.subr.mxu0 0.0
    %1215 = vmatpush1.msra.mxu0 0.0
    %1216 = vmatprep.subr.mxu0 0.0
    %1217 = vmatpush1.msra.mxu0 0.0
    %1218 = vmatprep.subr.mxu0 0.0
    %1219 = vmatpush1.msra.mxu0 0.0
    %1220 = vmatprep.subr.mxu0 0.0
    %1221 = vmatpush1.msra.mxu0 0.0
    %1222 = vmatprep.subr.mxu0 0.0
    %1223 = vmatpush1.msra.mxu0 0.0
    %1224 = vmatprep.subr.mxu0 0.0
    %1225 = vmatpush1.msra.mxu0 0.0
    %1226 = vmatprep.subr.mxu0 0.0
    %1227 = vmatpush1.msra.mxu0 0.0
    %1228 = vmatprep.mubr.f32.mxu0 0.0
    %1229 = vmatmul.mubr.f32.gmra.mrb[0].mxu0 %v1156
    %v1230 = vpop.f32.mrb[0].mxu0
    %v1231 = vadd.f32 0.0, %v1230
    %v1232 = vpop.f32.mrb[0].mxu0
    %v1233 = vadd.f32 0.0, %v1232
    %1234 = vdwg.mxu0
    %1235 = vmatprep.subr.mxu0 %v395
    %1236 = vmatpush1.msra.mxu0 %v394
    %1237 = vmatprep.subr.mxu0 %v399
    %1238 = vmatpush1.msra.mxu0 %v398
    %1239 = vmatprep.subr.mxu0 %v403
    %1240 = vmatpush1.msra.mxu0 %v402
    %1241 = vmatprep.subr.mxu0 %v407
    %1242 = vmatpush1.msra.mxu0 %v406
    %1243 = vmatprep.subr.mxu0 %v411
    %1244 = vmatpush1.msra.mxu0 %v410
    %1245 = vmatprep.subr.mxu0 %v415
    %1246 = vmatpush1.msra.mxu0 %v414
    %1247 = vmatprep.subr.mxu0 %v419
    %1248 = vmatpush1.msra.mxu0 %v418
    %1249 = vmatprep.subr.mxu0 %v423
    %1250 = vmatpush1.msra.mxu0 %v422
    %1251 = vmatprep.subr.mxu0 %v427
    %1252 = vmatpush1.msra.mxu0 %v426
    %1253 = vmatprep.subr.mxu0 %v431
    %1254 = vmatpush1.msra.mxu0 %v430
    %1255 = vmatprep.subr.mxu0 %v435
    %1256 = vmatpush1.msra.mxu0 %v434
    %1257 = vmatprep.subr.mxu0 %v439
    %1258 = vmatpush1.msra.mxu0 %v438
    %1259 = vmatprep.subr.mxu0 %v443
    %1260 = vmatpush1.msra.mxu0 %v442
    %1261 = vmatprep.subr.mxu0 %v447
    %1262 = vmatpush1.msra.mxu0 %v446
    %1263 = vmatprep.subr.mxu0 %v451
    %1264 = vmatpush1.msra.mxu0 %v450
    %1265 = vmatprep.subr.mxu0 %v455
    %1266 = vmatpush1.msra.mxu0 %v454
    %1267 = vmatprep.subr.mxu0 0.0
    %1268 = vmatpush1.msra.mxu0 0.0
    %1269 = vmatprep.subr.mxu0 0.0
    %1270 = vmatpush1.msra.mxu0 0.0
    %1271 = vmatprep.subr.mxu0 0.0
    %1272 = vmatpush1.msra.mxu0 0.0
    %1273 = vmatprep.subr.mxu0 0.0
    %1274 = vmatpush1.msra.mxu0 0.0
    %1275 = vmatprep.subr.mxu0 0.0
    %1276 = vmatpush1.msra.mxu0 0.0
    %1277 = vmatprep.subr.mxu0 0.0
    %1278 = vmatpush1.msra.mxu0 0.0
    %1279 = vmatprep.subr.mxu0 0.0
    %1280 = vmatpush1.msra.mxu0 0.0
    %1281 = vmatprep.subr.mxu0 0.0
    %1282 = vmatpush1.msra.mxu0 0.0
    %1283 = vmatprep.subr.mxu0 0.0
    %1284 = vmatpush1.msra.mxu0 0.0
    %1285 = vmatprep.subr.mxu0 0.0
    %1286 = vmatpush1.msra.mxu0 0.0
    %1287 = vmatprep.subr.mxu0 0.0
    %1288 = vmatpush1.msra.mxu0 0.0
    %1289 = vmatprep.subr.mxu0 0.0
    %1290 = vmatpush1.msra.mxu0 0.0
    %1291 = vmatprep.subr.mxu0 0.0
    %1292 = vmatpush1.msra.mxu0 0.0
    %1293 = vmatprep.subr.mxu0 0.0
    %1294 = vmatpush1.msra.mxu0 0.0
    %1295 = vmatprep.subr.mxu0 0.0
    %1296 = vmatpush1.msra.mxu0 0.0
    %1297 = vmatprep.subr.mxu0 0.0
    %1298 = vmatpush1.msra.mxu0 0.0
    %1299 = vmatprep.mubr.f32.mxu0 0.0
    %1300 = vmatmul.mubr.f32.gmra.mrb[0].mxu0 %v1156
    %v1301 = vpop.f32.mrb[0].mxu0
    %v1302 = vadd.f32 0.0, %v1301
    %v1303 = vpop.f32.mrb[0].mxu0
    %v1304 = vadd.f32 0.0, %v1303
    %1305 = vdwg.mxu0
    %v1306 = vadd.f32 %v1160, %v1231
    %v1307 = vadd.f32 %v1161, %v1233
    %v1308 = vadd.f32 %v1162, %v1302
    %v1309 = vadd.f32 %v1163, %v1304
    %v1310 = vxor.u32 %v1306, 2147483648
    %v1311 = vxor.u32 %v1307, 2147483648
    %v1312 = vxor.u32 %v1308, 2147483648
    %v1313 = vmul.f32 %v1310, 1.442695
    %v1314 = vpow.pop %v1313
    %v1315 = vmul.f32 %v1311, 1.442695
    %v1316 = vpow.pop %v1315
    %v1317 = vmul.f32 %v1312, 1.442695
    %v1318 = vpow.pop %v1317
    %v1319 = vadd.f32 %v1314, 1.0
    %v1320 = vadd.f32 %v1316, 1.0
    %v1321 = vadd.f32 %v1318, 1.0
    %v1322 = vrcp.pop %v1319
    %v1323 = vmul.f32 1.0, %v1322
    %v1324 = vrcp.pop %v1320
    %v1325 = vmul.f32 1.0, %v1324
    %v1326 = vrcp.pop %v1321
    %v1327 = vmul.f32 1.0, %v1326
    %v1328 = vtanh.pop %v1309
    %v1329 = vmul.f32 %v1325, %v1154
    %v1330 = vmul.f32 %v1323, %v1328
    %v1331 = vadd.f32 %v1329, %v1330
    %v1332 = vtanh.pop %v1331
    %v1333 = vmul.f32 %v1327, %v1332
    %s1334 = smul.u32 5, 4
    %s1335 = smul.addr %s1334, 8
    %s1336 = scalar_lea.vmem [#allocation4], %s1335
    %v1337 = vld [vmem:[%s1336] sm:$0xff]
    %v1338 = vld [vmem:[%s1336 + $0x8] sm:$0xff]
    %v1339 = vld [vmem:[%s1336 + $0x10] sm:$0xff]
    %v1340 = vld [vmem:[%s1336 + $0x18] sm:$0xff]
    %1341 = vmatprep.subr.mxu0 %v393
    %1342 = vmatpush1.msra.mxu0 %v392
    %1343 = vmatprep.subr.mxu0 %v397
    %1344 = vmatpush1.msra.mxu0 %v396
    %1345 = vmatprep.subr.mxu0 %v401
    %1346 = vmatpush1.msra.mxu0 %v400
    %1347 = vmatprep.subr.mxu0 %v405
    %1348 = vmatpush1.msra.mxu0 %v404
    %1349 = vmatprep.subr.mxu0 %v409
    %1350 = vmatpush1.msra.mxu0 %v408
    %1351 = vmatprep.subr.mxu0 %v413
    %1352 = vmatpush1.msra.mxu0 %v412
    %1353 = vmatprep.subr.mxu0 %v417
    %1354 = vmatpush1.msra.mxu0 %v416
    %1355 = vmatprep.subr.mxu0 %v421
    %1356 = vmatpush1.msra.mxu0 %v420
    %1357 = vmatprep.subr.mxu0 %v425
    %1358 = vmatpush1.msra.mxu0 %v424
    %1359 = vmatprep.subr.mxu0 %v429
    %1360 = vmatpush1.msra.mxu0 %v428
    %1361 = vmatprep.subr.mxu0 %v433
    %1362 = vmatpush1.msra.mxu0 %v432
    %1363 = vmatprep.subr.mxu0 %v437
    %1364 = vmatpush1.msra.mxu0 %v436
    %1365 = vmatprep.subr.mxu0 %v441
    %1366 = vmatpush1.msra.mxu0 %v440
    %1367 = vmatprep.subr.mxu0 %v445
    %1368 = vmatpush1.msra.mxu0 %v444
    %1369 = vmatprep.subr.mxu0 %v449
    %1370 = vmatpush1.msra.mxu0 %v448
    %1371 = vmatprep.subr.mxu0 %v453
    %1372 = vmatpush1.msra.mxu0 %v452
    %1373 = vmatprep.subr.mxu0 0.0
    %1374 = vmatpush1.msra.mxu0 0.0
    %1375 = vmatprep.subr.mxu0 0.0
    %1376 = vmatpush1.msra.mxu0 0.0
    %1377 = vmatprep.subr.mxu0 0.0
    %1378 = vmatpush1.msra.mxu0 0.0
    %1379 = vmatprep.subr.mxu0 0.0
    %1380 = vmatpush1.msra.mxu0 0.0
    %1381 = vmatprep.subr.mxu0 0.0
    %1382 = vmatpush1.msra.mxu0 0.0
    %1383 = vmatprep.subr.mxu0 0.0
    %1384 = vmatpush1.msra.mxu0 0.0
    %1385 = vmatprep.subr.mxu0 0.0
    %1386 = vmatpush1.msra.mxu0 0.0
    %1387 = vmatprep.subr.mxu0 0.0
    %1388 = vmatpush1.msra.mxu0 0.0
    %1389 = vmatprep.subr.mxu0 0.0
    %1390 = vmatpush1.msra.mxu0 0.0
    %1391 = vmatprep.subr.mxu0 0.0
    %1392 = vmatpush1.msra.mxu0 0.0
    %1393 = vmatprep.subr.mxu0 0.0
    %1394 = vmatpush1.msra.mxu0 0.0
    %1395 = vmatprep.subr.mxu0 0.0
    %1396 = vmatpush1.msra.mxu0 0.0
    %1397 = vmatprep.subr.mxu0 0.0
    %1398 = vmatpush1.msra.mxu0 0.0
    %1399 = vmatprep.subr.mxu0 0.0
    %1400 = vmatpush1.msra.mxu0 0.0
    %1401 = vmatprep.subr.mxu0 0.0
    %1402 = vmatpush1.msra.mxu0 0.0
    %1403 = vmatprep.subr.mxu0 0.0
    %1404 = vmatpush1.msra.mxu0 0.0
    %1405 = vmatprep.mubr.f32.mxu0 0.0
    %1406 = vmatmul.mubr.f32.gmra.mrb[0].mxu0 %v1333
    %v1407 = vpop.f32.mrb[0].mxu0
    %v1408 = vadd.f32 0.0, %v1407
    %v1409 = vpop.f32.mrb[0].mxu0
    %v1410 = vadd.f32 0.0, %v1409
    %1411 = vdwg.mxu0
    %1412 = vmatprep.subr.mxu0 %v395
    %1413 = vmatpush1.msra.mxu0 %v394
    %1414 = vmatprep.subr.mxu0 %v399
    %1415 = vmatpush1.msra.mxu0 %v398
    %1416 = vmatprep.subr.mxu0 %v403
    %1417 = vmatpush1.msra.mxu0 %v402
    %1418 = vmatprep.subr.mxu0 %v407
    %1419 = vmatpush1.msra.mxu0 %v406
    %1420 = vmatprep.subr.mxu0 %v411
    %1421 = vmatpush1.msra.mxu0 %v410
    %1422 = vmatprep.subr.mxu0 %v415
    %1423 = vmatpush1.msra.mxu0 %v414
    %1424 = vmatprep.subr.mxu0 %v419
    %1425 = vmatpush1.msra.mxu0 %v418
    %1426 = vmatprep.subr.mxu0 %v423
    %1427 = vmatpush1.msra.mxu0 %v422
    %1428 = vmatprep.subr.mxu0 %v427
    %1429 = vmatpush1.msra.mxu0 %v426
    %1430 = vmatprep.subr.mxu0 %v431
    %1431 = vmatpush1.msra.mxu0 %v430
    %1432 = vmatprep.subr.mxu0 %v435
    %1433 = vmatpush1.msra.mxu0 %v434
    %1434 = vmatprep.subr.mxu0 %v439
    %1435 = vmatpush1.msra.mxu0 %v438
    %1436 = vmatprep.subr.mxu0 %v443
    %1437 = vmatpush1.msra.mxu0 %v442
    %1438 = vmatprep.subr.mxu0 %v447
    %1439 = vmatpush1.msra.mxu0 %v446
    %1440 = vmatprep.subr.mxu0 %v451
    %1441 = vmatpush1.msra.mxu0 %v450
    %1442 = vmatprep.subr.mxu0 %v455
    %1443 = vmatpush1.msra.mxu0 %v454
    %1444 = vmatprep.subr.mxu0 0.0
    %1445 = vmatpush1.msra.mxu0 0.0
    %1446 = vmatprep.subr.mxu0 0.0
    %1447 = vmatpush1.msra.mxu0 0.0
    %1448 = vmatprep.subr.mxu0 0.0
    %1449 = vmatpush1.msra.mxu0 0.0
    %1450 = vmatprep.subr.mxu0 0.0
    %1451 = vmatpush1.msra.mxu0 0.0
    %1452 = vmatprep.subr.mxu0 0.0
    %1453 = vmatpush1.msra.mxu0 0.0
    %1454 = vmatprep.subr.mxu0 0.0
    %1455 = vmatpush1.msra.mxu0 0.0
    %1456 = vmatprep.subr.mxu0 0.0
    %1457 = vmatpush1.msra.mxu0 0.0
    %1458 = vmatprep.subr.mxu0 0.0
    %1459 = vmatpush1.msra.mxu0 0.0
    %1460 = vmatprep.subr.mxu0 0.0
    %1461 = vmatpush1.msra.mxu0 0.0
    %1462 = vmatprep.subr.mxu0 0.0
    %1463 = vmatpush1.msra.mxu0 0.0
    %1464 = vmatprep.subr.mxu0 0.0
    %1465 = vmatpush1.msra.mxu0 0.0
    %1466 = vmatprep.subr.mxu0 0.0
    %1467 = vmatpush1.msra.mxu0 0.0
    %1468 = vmatprep.subr.mxu0 0.0
    %1469 = vmatpush1.msra.mxu0 0.0
    %1470 = vmatprep.subr.mxu0 0.0
    %1471 = vmatpush1.msra.mxu0 0.0
    %1472 = vmatprep.subr.mxu0 0.0
    %1473 = vmatpush1.msra.mxu0 0.0
    %1474 = vmatprep.subr.mxu0 0.0
    %1475 = vmatpush1.msra.mxu0 0.0
    %1476 = vmatprep.mubr.f32.mxu0 0.0
    %1477 = vmatmul.mubr.f32.gmra.mrb[0].mxu0 %v1333
    %v1478 = vpop.f32.mrb[0].mxu0
    %v1479 = vadd.f32 0.0, %v1478
    %v1480 = vpop.f32.mrb[0].mxu0
    %v1481 = vadd.f32 0.0, %v1480
    %1482 = vdwg.mxu0
    %v1483 = vadd.f32 %v1337, %v1408
    %v1484 = vadd.f32 %v1338, %v1410
    %v1485 = vadd.f32 %v1339, %v1479
    %v1486 = vadd.f32 %v1340, %v1481
    %v1487 = vxor.u32 %v1483, 2147483648
    %v1488 = vxor.u32 %v1484, 2147483648
    %v1489 = vxor.u32 %v1485, 2147483648
    %v1490 = vmul.f32 %v1487, 1.442695
    %v1491 = vpow.pop %v1490
    %v1492 = vmul.f32 %v1488, 1.442695
    %v1493 = vpow.pop %v1492
    %v1494 = vmul.f32 %v1489, 1.442695
    %v1495 = vpow.pop %v1494
    %v1496 = vadd.f32 %v1491, 1.0
    %v1497 = vadd.f32 %v1493, 1.0
    %v1498 = vadd.f32 %v1495, 1.0
    %v1499 = vrcp.pop %v1496
    %v1500 = vmul.f32 1.0, %v1499
    %v1501 = vrcp.pop %v1497
    %v1502 = vmul.f32 1.0, %v1501
    %v1503 = vrcp.pop %v1498
    %v1504 = vmul.f32 1.0, %v1503
    %v1505 = vtanh.pop %v1486
    %v1506 = vmul.f32 %v1502, %v1331
    %v1507 = vmul.f32 %v1500, %v1505
    %v1508 = vadd.f32 %v1506, %v1507
    %v1509 = vtanh.pop %v1508
    %v1510 = vmul.f32 %v1504, %v1509
    %s1511 = smul.u32 6, 4
    %s1512 = smul.addr %s1511, 8
    %s1513 = scalar_lea.vmem [#allocation4], %s1512
    %v1514 = vld [vmem:[%s1513] sm:$0xff]
    %v1515 = vld [vmem:[%s1513 + $0x8] sm:$0xff]
    %v1516 = vld [vmem:[%s1513 + $0x10] sm:$0xff]
    %v1517 = vld [vmem:[%s1513 + $0x18] sm:$0xff]
    %1518 = vmatprep.subr.mxu0 %v393
    %1519 = vmatpush1.msra.mxu0 %v392
    %1520 = vmatprep.subr.mxu0 %v397
    %1521 = vmatpush1.msra.mxu0 %v396
    %1522 = vmatprep.subr.mxu0 %v401
    %1523 = vmatpush1.msra.mxu0 %v400
    %1524 = vmatprep.subr.mxu0 %v405
    %1525 = vmatpush1.msra.mxu0 %v404
    %1526 = vmatprep.subr.mxu0 %v409
    %1527 = vmatpush1.msra.mxu0 %v408
    %1528 = vmatprep.subr.mxu0 %v413
    %1529 = vmatpush1.msra.mxu0 %v412
    %1530 = vmatprep.subr.mxu0 %v417
    %1531 = vmatpush1.msra.mxu0 %v416
    %1532 = vmatprep.subr.mxu0 %v421
    %1533 = vmatpush1.msra.mxu0 %v420
    %1534 = vmatprep.subr.mxu0 %v425
    %1535 = vmatpush1.msra.mxu0 %v424
    %1536 = vmatprep.subr.mxu0 %v429
    %1537 = vmatpush1.msra.mxu0 %v428
    %1538 = vmatprep.subr.mxu0 %v433
    %1539 = vmatpush1.msra.mxu0 %v432
    %1540 = vmatprep.subr.mxu0 %v437
    %1541 = vmatpush1.msra.mxu0 %v436
    %1542 = vmatprep.subr.mxu0 %v441
    %1543 = vmatpush1.msra.mxu0 %v440
    %1544 = vmatprep.subr.mxu0 %v445
    %1545 = vmatpush1.msra.mxu0 %v444
    %1546 = vmatprep.subr.mxu0 %v449
    %1547 = vmatpush1.msra.mxu0 %v448
    %1548 = vmatprep.subr.mxu0 %v453
    %1549 = vmatpush1.msra.mxu0 %v452
    %1550 = vmatprep.subr.mxu0 0.0
    %1551 = vmatpush1.msra.mxu0 0.0
    %1552 = vmatprep.subr.mxu0 0.0
    %1553 = vmatpush1.msra.mxu0 0.0
    %1554 = vmatprep.subr.mxu0 0.0
    %1555 = vmatpush1.msra.mxu0 0.0
    %1556 = vmatprep.subr.mxu0 0.0
    %1557 = vmatpush1.msra.mxu0 0.0
    %1558 = vmatprep.subr.mxu0 0.0
    %1559 = vmatpush1.msra.mxu0 0.0
    %1560 = vmatprep.subr.mxu0 0.0
    %1561 = vmatpush1.msra.mxu0 0.0
    %1562 = vmatprep.subr.mxu0 0.0
    %1563 = vmatpush1.msra.mxu0 0.0
    %1564 = vmatprep.subr.mxu0 0.0
    %1565 = vmatpush1.msra.mxu0 0.0
    %1566 = vmatprep.subr.mxu0 0.0
    %1567 = vmatpush1.msra.mxu0 0.0
    %1568 = vmatprep.subr.mxu0 0.0
    %1569 = vmatpush1.msra.mxu0 0.0
    %1570 = vmatprep.subr.mxu0 0.0
    %1571 = vmatpush1.msra.mxu0 0.0
    %1572 = vmatprep.subr.mxu0 0.0
    %1573 = vmatpush1.msra.mxu0 0.0
    %1574 = vmatprep.subr.mxu0 0.0
    %1575 = vmatpush1.msra.mxu0 0.0
    %1576 = vmatprep.subr.mxu0 0.0
    %1577 = vmatpush1.msra.mxu0 0.0
    %1578 = vmatprep.subr.mxu0 0.0
    %1579 = vmatpush1.msra.mxu0 0.0
    %1580 = vmatprep.subr.mxu0 0.0
    %1581 = vmatpush1.msra.mxu0 0.0
    %1582 = vmatprep.mubr.f32.mxu0 0.0
    %1583 = vmatmul.mubr.f32.gmra.mrb[0].mxu0 %v1510
    %v1584 = vpop.f32.mrb[0].mxu0
    %v1585 = vadd.f32 0.0, %v1584
    %v1586 = vpop.f32.mrb[0].mxu0
    %v1587 = vadd.f32 0.0, %v1586
    %1588 = vdwg.mxu0
    %1589 = vmatprep.subr.mxu0 %v395
    %1590 = vmatpush1.msra.mxu0 %v394
    %1591 = vmatprep.subr.mxu0 %v399
    %1592 = vmatpush1.msra.mxu0 %v398
    %1593 = vmatprep.subr.mxu0 %v403
    %1594 = vmatpush1.msra.mxu0 %v402
    %1595 = vmatprep.subr.mxu0 %v407
    %1596 = vmatpush1.msra.mxu0 %v406
    %1597 = vmatprep.subr.mxu0 %v411
    %1598 = vmatpush1.msra.mxu0 %v410
    %1599 = vmatprep.subr.mxu0 %v415
    %1600 = vmatpush1.msra.mxu0 %v414
    %1601 = vmatprep.subr.mxu0 %v419
    %1602 = vmatpush1.msra.mxu0 %v418
    %1603 = vmatprep.subr.mxu0 %v423
    %1604 = vmatpush1.msra.mxu0 %v422
    %1605 = vmatprep.subr.mxu0 %v427
    %1606 = vmatpush1.msra.mxu0 %v426
    %1607 = vmatprep.subr.mxu0 %v431
    %1608 = vmatpush1.msra.mxu0 %v430
    %1609 = vmatprep.subr.mxu0 %v435
    %1610 = vmatpush1.msra.mxu0 %v434
    %1611 = vmatprep.subr.mxu0 %v439
    %1612 = vmatpush1.msra.mxu0 %v438
    %1613 = vmatprep.subr.mxu0 %v443
    %1614 = vmatpush1.msra.mxu0 %v442
    %1615 = vmatprep.subr.mxu0 %v447
    %1616 = vmatpush1.msra.mxu0 %v446
    %1617 = vmatprep.subr.mxu0 %v451
    %1618 = vmatpush1.msra.mxu0 %v450
    %1619 = vmatprep.subr.mxu0 %v455
    %1620 = vmatpush1.msra.mxu0 %v454
    %1621 = vmatprep.subr.mxu0 0.0
    %1622 = vmatpush1.msra.mxu0 0.0
    %1623 = vmatprep.subr.mxu0 0.0
    %1624 = vmatpush1.msra.mxu0 0.0
    %1625 = vmatprep.subr.mxu0 0.0
    %1626 = vmatpush1.msra.mxu0 0.0
    %1627 = vmatprep.subr.mxu0 0.0
    %1628 = vmatpush1.msra.mxu0 0.0
    %1629 = vmatprep.subr.mxu0 0.0
    %1630 = vmatpush1.msra.mxu0 0.0
    %1631 = vmatprep.subr.mxu0 0.0
    %1632 = vmatpush1.msra.mxu0 0.0
    %1633 = vmatprep.subr.mxu0 0.0
    %1634 = vmatpush1.msra.mxu0 0.0
    %1635 = vmatprep.subr.mxu0 0.0
    %1636 = vmatpush1.msra.mxu0 0.0
    %1637 = vmatprep.subr.mxu0 0.0
    %1638 = vmatpush1.msra.mxu0 0.0
    %1639 = vmatprep.subr.mxu0 0.0
    %1640 = vmatpush1.msra.mxu0 0.0
    %1641 = vmatprep.subr.mxu0 0.0
    %1642 = vmatpush1.msra.mxu0 0.0
    %1643 = vmatprep.subr.mxu0 0.0
    %1644 = vmatpush1.msra.mxu0 0.0
    %1645 = vmatprep.subr.mxu0 0.0
    %1646 = vmatpush1.msra.mxu0 0.0
    %1647 = vmatprep.subr.mxu0 0.0
    %1648 = vmatpush1.msra.mxu0 0.0
    %1649 = vmatprep.subr.mxu0 0.0
    %1650 = vmatpush1.msra.mxu0 0.0
    %1651 = vmatprep.subr.mxu0 0.0
    %1652 = vmatpush1.msra.mxu0 0.0
    %1653 = vmatprep.mubr.f32.mxu0 0.0
    %1654 = vmatmul.mubr.f32.gmra.mrb[0].mxu0 %v1510
    %v1655 = vpop.f32.mrb[0].mxu0
    %v1656 = vadd.f32 0.0, %v1655
    %v1657 = vpop.f32.mrb[0].mxu0
    %v1658 = vadd.f32 0.0, %v1657
    %1659 = vdwg.mxu0
    %v1660 = vadd.f32 %v1514, %v1585
    %v1661 = vadd.f32 %v1515, %v1587
    %v1662 = vadd.f32 %v1516, %v1656
    %v1663 = vadd.f32 %v1517, %v1658
    %v1664 = vxor.u32 %v1660, 2147483648
    %v1665 = vxor.u32 %v1661, 2147483648
    %v1666 = vxor.u32 %v1662, 2147483648
    %v1667 = vmul.f32 %v1664, 1.442695
    %v1668 = vpow.pop %v1667
    %v1669 = vmul.f32 %v1665, 1.442695
    %v1670 = vpow.pop %v1669
    %v1671 = vmul.f32 %v1666, 1.442695
    %v1672 = vpow.pop %v1671
    %v1673 = vadd.f32 %v1668, 1.0
    %v1674 = vadd.f32 %v1670, 1.0
    %v1675 = vadd.f32 %v1672, 1.0
    %v1676 = vrcp.pop %v1673
    %v1677 = vmul.f32 1.0, %v1676
    %v1678 = vrcp.pop %v1674
    %v1679 = vmul.f32 1.0, %v1678
    %v1680 = vrcp.pop %v1675
    %v1681 = vmul.f32 1.0, %v1680
    %v1682 = vtanh.pop %v1663
    %v1683 = vmul.f32 %v1679, %v1508
    %v1684 = vmul.f32 %v1677, %v1682
    %v1685 = vadd.f32 %v1683, %v1684
    %v1686 = vtanh.pop %v1685
    %v1687 = vmul.f32 %v1681, %v1686
    %s1688 = smul.u32 7, 4
    %s1689 = smul.addr %s1688, 8
    %s1690 = scalar_lea.vmem [#allocation4], %s1689
    %v1691 = vld [vmem:[%s1690] sm:$0xff]
    %v1692 = vld [vmem:[%s1690 + $0x8] sm:$0xff]
    %v1693 = vld [vmem:[%s1690 + $0x10] sm:$0xff]
    %v1694 = vld [vmem:[%s1690 + $0x18] sm:$0xff]
    %1695 = vmatprep.subr.mxu0 %v393
    %1696 = vmatpush1.msra.mxu0 %v392
    %1697 = vmatprep.subr.mxu0 %v397
    %1698 = vmatpush1.msra.mxu0 %v396
    %1699 = vmatprep.subr.mxu0 %v401
    %1700 = vmatpush1.msra.mxu0 %v400
    %1701 = vmatprep.subr.mxu0 %v405
    %1702 = vmatpush1.msra.mxu0 %v404
    %1703 = vmatprep.subr.mxu0 %v409
    %1704 = vmatpush1.msra.mxu0 %v408
    %1705 = vmatprep.subr.mxu0 %v413
    %1706 = vmatpush1.msra.mxu0 %v412
    %1707 = vmatprep.subr.mxu0 %v417
    %1708 = vmatpush1.msra.mxu0 %v416
    %1709 = vmatprep.subr.mxu0 %v421
    %1710 = vmatpush1.msra.mxu0 %v420
    %1711 = vmatprep.subr.mxu0 %v425
    %1712 = vmatpush1.msra.mxu0 %v424
    %1713 = vmatprep.subr.mxu0 %v429
    %1714 = vmatpush1.msra.mxu0 %v428
    %1715 = vmatprep.subr.mxu0 %v433
    %1716 = vmatpush1.msra.mxu0 %v432
    %1717 = vmatprep.subr.mxu0 %v437
    %1718 = vmatpush1.msra.mxu0 %v436
    %1719 = vmatprep.subr.mxu0 %v441
    %1720 = vmatpush1.msra.mxu0 %v440
    %1721 = vmatprep.subr.mxu0 %v445
    %1722 = vmatpush1.msra.mxu0 %v444
    %1723 = vmatprep.subr.mxu0 %v449
    %1724 = vmatpush1.msra.mxu0 %v448
    %1725 = vmatprep.subr.mxu0 %v453
    %1726 = vmatpush1.msra.mxu0 %v452
    %1727 = vmatprep.subr.mxu0 0.0
    %1728 = vmatpush1.msra.mxu0 0.0
    %1729 = vmatprep.subr.mxu0 0.0
    %1730 = vmatpush1.msra.mxu0 0.0
    %1731 = vmatprep.subr.mxu0 0.0
    %1732 = vmatpush1.msra.mxu0 0.0
    %1733 = vmatprep.subr.mxu0 0.0
    %1734 = vmatpush1.msra.mxu0 0.0
    %1735 = vmatprep.subr.mxu0 0.0
    %1736 = vmatpush1.msra.mxu0 0.0
    %1737 = vmatprep.subr.mxu0 0.0
    %1738 = vmatpush1.msra.mxu0 0.0
    %1739 = vmatprep.subr.mxu0 0.0
    %1740 = vmatpush1.msra.mxu0 0.0
    %1741 = vmatprep.subr.mxu0 0.0
    %1742 = vmatpush1.msra.mxu0 0.0
    %1743 = vmatprep.subr.mxu0 0.0
    %1744 = vmatpush1.msra.mxu0 0.0
    %1745 = vmatprep.subr.mxu0 0.0
    %1746 = vmatpush1.msra.mxu0 0.0
    %1747 = vmatprep.subr.mxu0 0.0
    %1748 = vmatpush1.msra.mxu0 0.0
    %1749 = vmatprep.subr.mxu0 0.0
    %1750 = vmatpush1.msra.mxu0 0.0
    %1751 = vmatprep.subr.mxu0 0.0
    %1752 = vmatpush1.msra.mxu0 0.0
    %1753 = vmatprep.subr.mxu0 0.0
    %1754 = vmatpush1.msra.mxu0 0.0
    %1755 = vmatprep.subr.mxu0 0.0
    %1756 = vmatpush1.msra.mxu0 0.0
    %1757 = vmatprep.subr.mxu0 0.0
    %1758 = vmatpush1.msra.mxu0 0.0
    %1759 = vmatprep.mubr.f32.mxu0 0.0
    %1760 = vmatmul.mubr.f32.gmra.mrb[0].mxu0 %v1687
    %v1761 = vpop.f32.mrb[0].mxu0
    %v1762 = vadd.f32 0.0, %v1761
    %v1763 = vpop.f32.mrb[0].mxu0
    %v1764 = vadd.f32 0.0, %v1763
    %1765 = vdwg.mxu0
    %1766 = vmatprep.subr.mxu0 %v395
    %1767 = vmatpush1.msra.mxu0 %v394
    %1768 = vmatprep.subr.mxu0 %v399
    %1769 = vmatpush1.msra.mxu0 %v398
    %1770 = vmatprep.subr.mxu0 %v403
    %1771 = vmatpush1.msra.mxu0 %v402
    %1772 = vmatprep.subr.mxu0 %v407
    %1773 = vmatpush1.msra.mxu0 %v406
    %1774 = vmatprep.subr.mxu0 %v411
    %1775 = vmatpush1.msra.mxu0 %v410
    %1776 = vmatprep.subr.mxu0 %v415
    %1777 = vmatpush1.msra.mxu0 %v414
    %1778 = vmatprep.subr.mxu0 %v419
    %1779 = vmatpush1.msra.mxu0 %v418
    %1780 = vmatprep.subr.mxu0 %v423
    %1781 = vmatpush1.msra.mxu0 %v422
    %1782 = vmatprep.subr.mxu0 %v427
    %1783 = vmatpush1.msra.mxu0 %v426
    %1784 = vmatprep.subr.mxu0 %v431
    %1785 = vmatpush1.msra.mxu0 %v430
    %1786 = vmatprep.subr.mxu0 %v435
    %1787 = vmatpush1.msra.mxu0 %v434
    %1788 = vmatprep.subr.mxu0 %v439
    %1789 = vmatpush1.msra.mxu0 %v438
    %1790 = vmatprep.subr.mxu0 %v443
    %1791 = vmatpush1.msra.mxu0 %v442
    %1792 = vmatprep.subr.mxu0 %v447
    %1793 = vmatpush1.msra.mxu0 %v446
    %1794 = vmatprep.subr.mxu0 %v451
    %1795 = vmatpush1.msra.mxu0 %v450
    %1796 = vmatprep.subr.mxu0 %v455
    %1797 = vmatpush1.msra.mxu0 %v454
    %1798 = vmatprep.subr.mxu0 0.0
    %1799 = vmatpush1.msra.mxu0 0.0
    %1800 = vmatprep.subr.mxu0 0.0
    %1801 = vmatpush1.msra.mxu0 0.0
    %1802 = vmatprep.subr.mxu0 0.0
    %1803 = vmatpush1.msra.mxu0 0.0
    %1804 = vmatprep.subr.mxu0 0.0
    %1805 = vmatpush1.msra.mxu0 0.0
    %1806 = vmatprep.subr.mxu0 0.0
    %1807 = vmatpush1.msra.mxu0 0.0
    %1808 = vmatprep.subr.mxu0 0.0
    %1809 = vmatpush1.msra.mxu0 0.0
    %1810 = vmatprep.subr.mxu0 0.0
    %1811 = vmatpush1.msra.mxu0 0.0
    %1812 = vmatprep.subr.mxu0 0.0
    %1813 = vmatpush1.msra.mxu0 0.0
    %1814 = vmatprep.subr.mxu0 0.0
    %1815 = vmatpush1.msra.mxu0 0.0
    %1816 = vmatprep.subr.mxu0 0.0
    %1817 = vmatpush1.msra.mxu0 0.0
    %1818 = vmatprep.subr.mxu0 0.0
    %1819 = vmatpush1.msra.mxu0 0.0
    %1820 = vmatprep.subr.mxu0 0.0
    %1821 = vmatpush1.msra.mxu0 0.0
    %1822 = vmatprep.subr.mxu0 0.0
    %1823 = vmatpush1.msra.mxu0 0.0
    %1824 = vmatprep.subr.mxu0 0.0
    %1825 = vmatpush1.msra.mxu0 0.0
    %1826 = vmatprep.subr.mxu0 0.0
    %1827 = vmatpush1.msra.mxu0 0.0
    %1828 = vmatprep.subr.mxu0 0.0
    %1829 = vmatpush1.msra.mxu0 0.0
    %1830 = vmatprep.mubr.f32.mxu0 0.0
    %1831 = vmatmul.mubr.f32.gmra.mrb[0].mxu0 %v1687
    %v1832 = vpop.f32.mrb[0].mxu0
    %v1833 = vadd.f32 0.0, %v1832
    %v1834 = vpop.f32.mrb[0].mxu0
    %v1835 = vadd.f32 0.0, %v1834
    %1836 = vdwg.mxu0
    %v1837 = vadd.f32 %v1691, %v1762
    %v1838 = vadd.f32 %v1692, %v1764
    %v1839 = vadd.f32 %v1693, %v1833
    %v1840 = vadd.f32 %v1694, %v1835
    %v1841 = vxor.u32 %v1837, 2147483648
    %v1842 = vxor.u32 %v1838, 2147483648
    %v1843 = vxor.u32 %v1839, 2147483648
    %v1844 = vmul.f32 %v1841, 1.442695
    %v1845 = vpow.pop %v1844
    %v1846 = vmul.f32 %v1842, 1.442695
    %v1847 = vpow.pop %v1846
    %v1848 = vmul.f32 %v1843, 1.442695
    %v1849 = vpow.pop %v1848
    %v1850 = vadd.f32 %v1845, 1.0
    %v1851 = vadd.f32 %v1847, 1.0
    %v1852 = vadd.f32 %v1849, 1.0
    %v1853 = vrcp.pop %v1850
    %v1854 = vmul.f32 1.0, %v1853
    %v1855 = vrcp.pop %v1851
    %v1856 = vmul.f32 1.0, %v1855
    %v1857 = vrcp.pop %v1852
    %v1858 = vmul.f32 1.0, %v1857
    %v1859 = vtanh.pop %v1840
    %v1860 = vmul.f32 %v1856, %v1685
    %v1861 = vmul.f32 %v1854, %v1859
    %v1862 = vadd.f32 %v1860, %v1861
    %v1863 = vtanh.pop %v1862
    %v1864 = vmul.f32 %v1858, %v1863
    %1865 = vst [vmem:[#allocation2] sm:$0xff] %v1864
    %1866 = vst [vmem:[#allocation3] sm:$0xff] %v1862
    // Predicated region
    $region42: #{tpu_custom_call.1} parent=1 // pred_check
      %p1867 = pneg %p43
    $region43: #{tpu_custom_call.1} parent=1 // pred_check_branch
      %1869 = sbr.rel (%p1867) target = $region45
    $region44: #{tpu_custom_call.1} parent=1 // pred_region
      %v1870 = vld [vmem:[%s4] sm:$0xff]
      %v1871 = vld [vmem:[%s4 + $0x8] sm:$0xff]
      %v1872 = vld [vmem:[%s4 + $0x10] sm:$0xff]
      %v1873 = vld [vmem:[%s4 + $0x18] sm:$0xff]
      %v1874 = vld [vmem:[%s4 + $0x20] sm:$0xff]
      %v1875 = vld [vmem:[%s4 + $0x28] sm:$0xff]
      %v1876 = vld [vmem:[%s4 + $0x30] sm:$0xff]
      %v1877 = vld [vmem:[%s4 + $0x38] sm:$0xff]
      %v1878 = vld [vmem:[%s4 + $0x40] sm:$0xff]
      %v1879 = vld [vmem:[%s4 + $0x48] sm:$0xff]
      %v1880 = vld [vmem:[%s4 + $0x50] sm:$0xff]
      %v1881 = vld [vmem:[%s4 + $0x58] sm:$0xff]
      %v1882 = vld [vmem:[%s4 + $0x60] sm:$0xff]
      %v1883 = vld [vmem:[%s4 + $0x68] sm:$0xff]
      %v1884 = vld [vmem:[%s4 + $0x70] sm:$0xff]
      %v1885 = vld [vmem:[%s4 + $0x78] sm:$0xff]
      %v1886 = vld [vmem:[%s5] sm:$0x1]
      %v1888 = vlaneseq
      %v1889 = vshrl.u32 %v1888, 7
      %v1890 = vsub.s32 0, %v1889
      %v1891 = vrot.slane %v1886, %v1890
      %1893 = vmatprep.subr.mxu0 0.0
      %1894 = vmatpush1.msra.mxu0 %v1870
      %1895 = vmatprep.subr.mxu0 0.0
      %1896 = vmatpush1.msra.mxu0 %v1871
      %1897 = vmatprep.subr.mxu0 0.0
      %1898 = vmatpush1.msra.mxu0 %v1872
      %1899 = vmatprep.subr.mxu0 0.0
      %1900 = vmatpush1.msra.mxu0 %v1873
      %1901 = vmatprep.subr.mxu0 0.0
      %1902 = vmatpush1.msra.mxu0 %v1874
      %1903 = vmatprep.subr.mxu0 0.0
      %1904 = vmatpush1.msra.mxu0 %v1875
      %1905 = vmatprep.subr.mxu0 0.0
      %1906 = vmatpush1.msra.mxu0 %v1876
      %1907 = vmatprep.subr.mxu0 0.0
      %1908 = vmatpush1.msra.mxu0 %v1877
      %1909 = vmatprep.subr.mxu0 0.0
      %1910 = vmatpush1.msra.mxu0 %v1878
      %1911 = vmatprep.subr.mxu0 0.0
      %1912 = vmatpush1.msra.mxu0 %v1879
      %1913 = vmatprep.subr.mxu0 0.0
      %1914 = vmatpush1.msra.mxu0 %v1880
      %1915 = vmatprep.subr.mxu0 0.0
      %1916 = vmatpush1.msra.mxu0 %v1881
      %1917 = vmatprep.subr.mxu0 0.0
      %1918 = vmatpush1.msra.mxu0 %v1882
      %1919 = vmatprep.subr.mxu0 0.0
      %1920 = vmatpush1.msra.mxu0 %v1883
      %1921 = vmatprep.subr.mxu0 0.0
      %1922 = vmatpush1.msra.mxu0 %v1884
      %1923 = vmatprep.subr.mxu0 0.0
      %1924 = vmatpush1.msra.mxu0 %v1885
      %1925 = vmatprep.subr.mxu0 0.0
      %1926 = vmatpush1.msra.mxu0 0.0
      %1927 = vmatprep.subr.mxu0 0.0
      %1928 = vmatpush1.msra.mxu0 0.0
      %1929 = vmatprep.subr.mxu0 0.0
      %1930 = vmatpush1.msra.mxu0 0.0
      %1931 = vmatprep.subr.mxu0 0.0
      %1932 = vmatpush1.msra.mxu0 0.0
      %1933 = vmatprep.subr.mxu0 0.0
      %1934 = vmatpush1.msra.mxu0 0.0
      %1935 = vmatprep.subr.mxu0 0.0
      %1936 = vmatpush1.msra.mxu0 0.0
      %1937 = vmatprep.subr.mxu0 0.0
      %1938 = vmatpush1.msra.mxu0 0.0
      %1939 = vmatprep.subr.mxu0 0.0
      %1940 = vmatpush1.msra.mxu0 0.0
      %1941 = vmatprep.subr.mxu0 0.0
      %1942 = vmatpush1.msra.mxu0 0.0
      %1943 = vmatprep.subr.mxu0 0.0
      %1944 = vmatpush1.msra.mxu0 0.0
      %1945 = vmatprep.subr.mxu0 0.0
      %1946 = vmatpush1.msra.mxu0 0.0
      %1947 = vmatprep.subr.mxu0 0.0
      %1948 = vmatpush1.msra.mxu0 0.0
      %1949 = vmatprep.subr.mxu0 0.0
      %1950 = vmatpush1.msra.mxu0 0.0
      %1951 = vmatprep.subr.mxu0 0.0
      %1952 = vmatpush1.msra.mxu0 0.0
      %1953 = vmatprep.subr.mxu0 0.0
      %1954 = vmatpush1.msra.mxu0 0.0
      %1955 = vmatprep.subr.mxu0 0.0
      %1956 = vmatpush1.msra.mxu0 0.0
      %1957 = vmatprep.mubr.f32.mxu0 0.0
      %1958 = vmatmul.mubr.f32.gmra.mrb[0].mxu0 %v1864
      %v1959 = vpop.f32.mrb[0].mxu0
      %v1960 = vadd.f32 %v1891, %v1959
      %v1961 = vpop.f32.mrb[0].mxu0
      %1962 = vdwg.mxu0
      %v1963 = vtanh.pop %v1960
      %v1964 = vld [vmem:[%s6] sm:$0xff]
      %v1965 = vld [vmem:[%s6 + $0x8] sm:$0xff]
      %v1966 = vld [vmem:[%s6 + $0x10] sm:$0xff]
      %v1967 = vld [vmem:[%s6 + $0x18] sm:$0xff]
      %v1968 = vld [vmem:[%s6 + $0x20] sm:$0xff]
      %v1969 = vld [vmem:[%s6 + $0x28] sm:$0xff]
      %v1970 = vld [vmem:[%s6 + $0x30] sm:$0xff]
      %v1971 = vld [vmem:[%s6 + $0x38] sm:$0xff]
      %v1972 = vld [vmem:[%s6 + $0x40] sm:$0xff]
      %v1973 = vld [vmem:[%s6 + $0x48] sm:$0xff]
      %v1974 = vld [vmem:[%s6 + $0x50] sm:$0xff]
      %v1975 = vld [vmem:[%s6 + $0x58] sm:$0xff]
      %v1976 = vld [vmem:[%s6 + $0x60] sm:$0xff]
      %v1977 = vld [vmem:[%s6 + $0x68] sm:$0xff]
      %v1978 = vld [vmem:[%s6 + $0x70] sm:$0xff]
      %v1979 = vld [vmem:[%s6 + $0x78] sm:$0xff]
      %v1980 = vld [vmem:[%s7] sm:$0x1]
      %v1982 = vlaneseq
      %v1983 = vshrl.u32 %v1982, 7
      %v1984 = vsub.s32 0, %v1983
      %v1985 = vrot.slane %v1980, %v1984
      %1987 = vmatprep.subr.mxu0 0.0
      %1988 = vmatpush1.msra.mxu0 %v1964
      %1989 = vmatprep.subr.mxu0 0.0
      %1990 = vmatpush1.msra.mxu0 %v1965
      %1991 = vmatprep.subr.mxu0 0.0
      %1992 = vmatpush1.msra.mxu0 %v1966
      %1993 = vmatprep.subr.mxu0 0.0
      %1994 = vmatpush1.msra.mxu0 %v1967
      %1995 = vmatprep.subr.mxu0 0.0
      %1996 = vmatpush1.msra.mxu0 %v1968
      %1997 = vmatprep.subr.mxu0 0.0
      %1998 = vmatpush1.msra.mxu0 %v1969
      %1999 = vmatprep.subr.mxu0 0.0
      %2000 = vmatpush1.msra.mxu0 %v1970
      %2001 = vmatprep.subr.mxu0 0.0
      %2002 = vmatpush1.msra.mxu0 %v1971
      %2003 = vmatprep.subr.mxu0 0.0
      %2004 = vmatpush1.msra.mxu0 %v1972
      %2005 = vmatprep.subr.mxu0 0.0
      %2006 = vmatpush1.msra.mxu0 %v1973
      %2007 = vmatprep.subr.mxu0 0.0
      %2008 = vmatpush1.msra.mxu0 %v1974
      %2009 = vmatprep.subr.mxu0 0.0
      %2010 = vmatpush1.msra.mxu0 %v1975
      %2011 = vmatprep.subr.mxu0 0.0
      %2012 = vmatpush1.msra.mxu0 %v1976
      %2013 = vmatprep.subr.mxu0 0.0
      %2014 = vmatpush1.msra.mxu0 %v1977
      %2015 = vmatprep.subr.mxu0 0.0
      %2016 = vmatpush1.msra.mxu0 %v1978
      %2017 = vmatprep.subr.mxu0 0.0
      %2018 = vmatpush1.msra.mxu0 %v1979
      %2019 = vmatprep.subr.mxu0 0.0
      %2020 = vmatpush1.msra.mxu0 0.0
      %2021 = vmatprep.subr.mxu0 0.0
      %2022 = vmatpush1.msra.mxu0 0.0
      %2023 = vmatprep.subr.mxu0 0.0
      %2024 = vmatpush1.msra.mxu0 0.0
      %2025 = vmatprep.subr.mxu0 0.0
      %2026 = vmatpush1.msra.mxu0 0.0
      %2027 = vmatprep.subr.mxu0 0.0
      %2028 = vmatpush1.msra.mxu0 0.0
      %2029 = vmatprep.subr.mxu0 0.0
      %2030 = vmatpush1.msra.mxu0 0.0
      %2031 = vmatprep.subr.mxu0 0.0
      %2032 = vmatpush1.msra.mxu0 0.0
      %2033 = vmatprep.subr.mxu0 0.0
      %2034 = vmatpush1.msra.mxu0 0.0
      %2035 = vmatprep.subr.mxu0 0.0
      %2036 = vmatpush1.msra.mxu0 0.0
      %2037 = vmatprep.subr.mxu0 0.0
      %2038 = vmatpush1.msra.mxu0 0.0
      %2039 = vmatprep.subr.mxu0 0.0
      %2040 = vmatpush1.msra.mxu0 0.0
      %2041 = vmatprep.subr.mxu0 0.0
      %2042 = vmatpush1.msra.mxu0 0.0
      %2043 = vmatprep.subr.mxu0 0.0
      %2044 = vmatpush1.msra.mxu0 0.0
      %2045 = vmatprep.subr.mxu0 0.0
      %2046 = vmatpush1.msra.mxu0 0.0
      %2047 = vmatprep.subr.mxu0 0.0
      %2048 = vmatpush1.msra.mxu0 0.0
      %2049 = vmatprep.subr.mxu0 0.0
      %2050 = vmatpush1.msra.mxu0 0.0
      %2051 = vmatprep.mubr.f32.mxu0 0.0
      %2052 = vmatmul.mubr.f32.gmra.mrb[0].mxu0 %v1963
      %v2053 = vpop.f32.mrb[0].mxu0
      %v2054 = vadd.f32 %v1985, %v2053
      %v2055 = vpop.f32.mrb[0].mxu0
      %2056 = vdwg.mxu0
      %v2057 = vtanh.pop %v2054
      %vm2058 = vcmask 23552
      %2059 = vst.msk [vmem:[%s8] sm:$0xff] %vm2058, %v2057
    $region45: #{tpu_custom_call.1} parent=1 // pred_fallthru
      _
    // Predicated region
    $region46: #{tpu_custom_call.1} parent=1 // pred_check
      _
    $region47: #{tpu_custom_call.1} parent=1 // pred_check_branch
      %2061 = sbr.rel (0) target = $region49
    $region48: #{tpu_custom_call.1} parent=1 // pred_region
      _
    $region49: #{tpu_custom_call.1} parent=1 // pred_fallthru
      _
    // Predicated region
    $region50: #{tpu_custom_call.1} parent=1 // pred_check
      _
    $region51: #{tpu_custom_call.1} parent=1 // pred_check_branch
      %2063 = sbr.rel (0) target = $region53
    $region52: #{tpu_custom_call.1} parent=1 // pred_region
      _
    $region53: #{tpu_custom_call.1} parent=1 // pred_fallthru
      _
    %2064 = vsyncpa [#allocation6], 1

</llo_original>
